<compile_context>
chip_gen: v5e
topology: v5e:2x2
jax: 0.10.0
libtpu: 0.0.40
codegen_flags: <defaults>
</compile_context>

<pallas_src>
import jax
import jax.numpy as jnp
from jax.experimental import pallas as pl
from jax.experimental.pallas import tpu as pltpu


def _round_up(x, m):
    return (x + m - 1) // m * m


def actor_kernel(s_ref, w1_ref, b1_ref, w2_ref, b2_ref, w3_ref, b3_ref, o_ref):
    wdt = w1_ref.dtype  # matmul dtype (bf16 for the MXU-native path)

    # layer 1: Linear(state_dim -> 800) + ReLU   (f32 accumulate, f32 epilogue)
    h1 = jnp.dot(s_ref[...].astype(wdt), w1_ref[...],
                 preferred_element_type=jnp.float32)
    h1 = jnp.maximum(h1 + b1_ref[...], 0.0)

    # layer 2: Linear(800 -> 600) + ReLU
    h2 = jnp.dot(h1.astype(wdt), w2_ref[...],
                 preferred_element_type=jnp.float32)
    h2 = jnp.maximum(h2 + b2_ref[...], 0.0)

    # layer 3: Linear(600 -> action_dim_padded) + Tanh
    h3 = jnp.dot(h2.astype(wdt), w3_ref[...],
                 preferred_element_type=jnp.float32)
    o_ref[...] = jnp.tanh(h3 + b3_ref[...]).astype(o_ref.dtype)


def actor_forward(s, params, *, block_b=256):
    """s: [B, state_dim] float32.

    params: weights [in, out] (bf16 or f32), biases [1, out] (f32).
    Returns [B, action_dim] float32 actions in (-1, 1).
    """
    w1, b1, w2, b2, w3, b3 = (
        params["w1"], params["b1"],
        params["w2"], params["b2"],
        params["w3"], params["b3"],
    )
    B, state_dim = s.shape
    action_dim = w3.shape[1]

    # ---- lane-dense output: pad layer-3 out-dim to a multiple of 128 ----
    n3 = _round_up(max(action_dim, 128), 128)
    if n3 != action_dim:
        w3p = jnp.zeros((w3.shape[0], n3), w3.dtype).at[:, :action_dim].set(w3)
        b3p = jnp.zeros((1, n3), b3.dtype).at[:, :action_dim].set(b3)
    else:
        w3p, b3p = w3, b3

    # ---- batch tiling (pad batch to a multiple of the tile size) ----
    tb = min(block_b, _round_up(B, 8))
    bp = _round_up(B, tb)
    if bp != B:
        s = jnp.pad(s, ((0, bp - B), (0, 0)))

    grid = (pl.cdiv(bp, tb),)
    const2 = lambda i: (0, 0)  # weights/biases stay VMEM-resident across tiles

    out = pl.pallas_call(
        actor_kernel,
        out_shape=jax.ShapeDtypeStruct((bp, n3), jnp.float32),
        grid=grid,
        in_specs=[
            pl.BlockSpec((tb, state_dim), lambda i: (i, 0)),   # s tile streams
            pl.BlockSpec(w1.shape, const2),
            pl.BlockSpec(b1.shape, const2),
            pl.BlockSpec(w2.shape, const2),
            pl.BlockSpec(b2.shape, const2),
            pl.BlockSpec(w3p.shape, const2),
            pl.BlockSpec(b3p.shape, const2),
        ],
        out_specs=pl.BlockSpec((tb, n3), lambda i: (i, 0)),
        compiler_params=pltpu.CompilerParams(
            dimension_semantics=("parallel",),
            vmem_limit_bytes=32 << 20,
        ),
    )(s, w1, b1, w2, b2, w3p, b3p)

    return out[:B, :action_dim]


def init_actor_params(key, state_dim, action_dim, weight_dtype=jnp.bfloat16):
    """PyTorch nn.Linear-style init (U[-1/sqrt(fan_in), +1/sqrt(fan_in)]).

    Weights stored transposed vs torch: [in_features, out_features], cast to
    `weight_dtype` (bf16 by default for MXU-native matmuls / half HBM traffic).
    Biases stay f32 (epilogue runs in f32).
    """
    def linear(k, fan_in, fan_out):
        kw, kb = jax.random.split(k)
        bound = 1.0 / jnp.sqrt(fan_in)
        w = jax.random.uniform(kw, (fan_in, fan_out), jnp.float32, -bound, bound)
        b = jax.random.uniform(kb, (1, fan_out), jnp.float32, -bound, bound)
        return w.astype(weight_dtype), b

    k1, k2, k3 = jax.random.split(key, 3)
    w1, b1 = linear(k1, state_dim, 800)
    w2, b2 = linear(k2, 800, 600)
    w3, b3 = linear(k3, 600, action_dim)
    return {"w1": w1, "b1": b1, "w2": w2, "b2": b2, "w3": w3, "b3": b3}


def actor_forward_ref(s, p):
    """Pure-JAX reference with identical dtype behavior (bf16 dots, f32 acc)."""
    wdt = p["w1"].dtype
    h1 = jnp.maximum(
        jnp.dot(s.astype(wdt), p["w1"], preferred_element_type=jnp.float32)
        + p["b1"], 0.0)
    h2 = jnp.maximum(
        jnp.dot(h1.astype(wdt), p["w2"], preferred_element_type=jnp.float32)
        + p["b2"], 0.0)
    h3 = jnp.dot(h2.astype(wdt), p["w3"], preferred_element_type=jnp.float32)
    return jnp.tanh(h3 + p["b3"])


def actor_forward_ref_f32(s, p):
    """Full-f32 reference matching the original PyTorch module semantics."""
    w1, w2, w3 = (p["w1"].astype(jnp.float32), p["w2"].astype(jnp.float32),
                  p["w3"].astype(jnp.float32))
    h1 = jnp.maximum(s @ w1 + p["b1"], 0.0)
    h2 = jnp.maximum(h1 @ w2 + p["b2"], 0.0)
    return jnp.tanh(h2 @ w3 + p["b3"])


if __name__ == "__main__":
    key = jax.random.PRNGKey(0)
    k_params, k_state, k_big = jax.random.split(key, 3)

    batch = 2
    state_dim = 24   # laser scan bins + goal/heading features
    action_dim = 2   # (linear velocity, angular velocity)

    params = init_actor_params(k_params, state_dim, action_dim)
    s = jax.random.normal(k_state, (batch, state_dim), jnp.float32)

    # --- small-batch run (required check) ---
    out = jax.block_until_ready(actor_forward(s, params))
    assert out.shape == (batch, action_dim)

    ref = actor_forward_ref(s, params)
    assert jnp.allclose(out, ref, atol=2e-3, rtol=2e-3), \
        "mismatch vs dtype-matched JAX reference"

    ref32 = actor_forward_ref_f32(s, params)
    assert jnp.allclose(out, ref32, atol=1e-1), \
        "mismatch vs full-f32 reference (semantic check)"

    # --- larger batch exercises the multi-tile (grid > 1) path ---
    s_big = jax.random.normal(k_big, (512, state_dim), jnp.float32)
    out_big = jax.block_until_ready(actor_forward(s_big, params))
    ref_big = actor_forward_ref(s_big, params)
    assert out_big.shape == (512, action_dim)
    assert jnp.allclose(out_big, ref_big, atol=2e-3, rtol=2e-3), \
        "mismatch vs reference at batch=512"

    print("KERNEL_OK")
</pallas_src>

<mosaic_0001>
module attributes {stable_mosaic.version = 11 : i64} {
  func.func @actor_kernel(%arg0: i32, %arg1: memref<8x24xf32, #tpu.memory_space<vmem>>, %arg2: memref<24x800xbf16, #tpu.memory_space<vmem>>, %arg3: memref<1x800xf32, #tpu.memory_space<vmem>>, %arg4: memref<800x600xbf16, #tpu.memory_space<vmem>>, %arg5: memref<1x600xf32, #tpu.memory_space<vmem>>, %arg6: memref<600x128xbf16, #tpu.memory_space<vmem>>, %arg7: memref<1x128xf32, #tpu.memory_space<vmem>>, %arg8: memref<8x128xf32, #tpu.memory_space<vmem>>) attributes {dimension_semantics = [#tpu.dimension_semantics<parallel>], iteration_bounds = array<i64: 1>, scalar_prefetch = 0 : i64, scratch_operands = 0 : i64, tpu.core_type = #tpu.core_type<tc>, window_params = [{transform_indices = @transform_0, window_bounds = array<i64: 8, 24>}, {pipeline_mode = #tpu.pipeline_mode<synchronous>, transform_indices = @transform_1, window_bounds = array<i64: 24, 800>}, {pipeline_mode = #tpu.pipeline_mode<synchronous>, transform_indices = @transform_2, window_bounds = array<i64: 1, 800>}, {pipeline_mode = #tpu.pipeline_mode<synchronous>, transform_indices = @transform_3, window_bounds = array<i64: 800, 600>}, {pipeline_mode = #tpu.pipeline_mode<synchronous>, transform_indices = @transform_4, window_bounds = array<i64: 1, 600>}, {pipeline_mode = #tpu.pipeline_mode<synchronous>, transform_indices = @transform_5, window_bounds = array<i64: 600, 128>}, {pipeline_mode = #tpu.pipeline_mode<synchronous>, transform_indices = @transform_6, window_bounds = array<i64: 1, 128>}, {transform_indices = @transform_7, window_bounds = array<i64: 8, 128>}]} {
    %c0 = arith.constant 0 : index
    %c0_0 = arith.constant 0 : index
    %0 = vector.load %arg1[%c0, %c0_0] : memref<8x24xf32, #tpu.memory_space<vmem>>, vector<8x24xf32>
    %1 = arith.truncf %0 : vector<8x24xf32> to vector<8x24xbf16>
    %c0_1 = arith.constant 0 : index
    %c0_2 = arith.constant 0 : index
    %2 = vector.load %arg2[%c0_1, %c0_2] : memref<24x800xbf16, #tpu.memory_space<vmem>>, vector<24x800xbf16>
    %cst = arith.constant dense<0.000000e+00> : vector<8x800xf32>
    %3 = tpu.matmul %1, %2, %cst {dimension_numbers = #tpu.dot_dimension_numbers<[1], [0], [0], [1], [0, 0, 1, 1], [], []>} : vector<8x24xbf16>, vector<24x800xbf16>, vector<8x800xf32> -> vector<8x800xf32>
    %c0_3 = arith.constant 0 : index
    %c0_4 = arith.constant 0 : index
    %4 = vector.load %arg3[%c0_3, %c0_4] : memref<1x800xf32, #tpu.memory_space<vmem>>, vector<1x800xf32>
    %5 = vector.broadcast %4 : vector<1x800xf32> to vector<8x800xf32>
    %6 = arith.addf %3, %5 : vector<8x800xf32>
    %cst_5 = arith.constant 0.000000e+00 : f32
    %7 = vector.broadcast %cst_5 : f32 to vector<8x800xf32>
    %8 = arith.maximumf %6, %7 : vector<8x800xf32>
    %9 = arith.truncf %8 : vector<8x800xf32> to vector<8x800xbf16>
    %c0_6 = arith.constant 0 : index
    %c0_7 = arith.constant 0 : index
    %10 = vector.load %arg4[%c0_6, %c0_7] : memref<800x600xbf16, #tpu.memory_space<vmem>>, vector<800x600xbf16>
    %cst_8 = arith.constant dense<0.000000e+00> : vector<8x600xf32>
    %11 = tpu.matmul %9, %10, %cst_8 {dimension_numbers = #tpu.dot_dimension_numbers<[1], [0], [0], [1], [0, 0, 1, 1], [], []>} : vector<8x800xbf16>, vector<800x600xbf16>, vector<8x600xf32> -> vector<8x600xf32>
    %c0_9 = arith.constant 0 : index
    %c0_10 = arith.constant 0 : index
    %12 = vector.load %arg5[%c0_9, %c0_10] : memref<1x600xf32, #tpu.memory_space<vmem>>, vector<1x600xf32>
    %13 = vector.broadcast %12 : vector<1x600xf32> to vector<8x600xf32>
    %14 = arith.addf %11, %13 : vector<8x600xf32>
    %cst_11 = arith.constant 0.000000e+00 : f32
    %15 = vector.broadcast %cst_11 : f32 to vector<8x600xf32>
    %16 = arith.maximumf %14, %15 : vector<8x600xf32>
    %17 = arith.truncf %16 : vector<8x600xf32> to vector<8x600xbf16>
    %c0_12 = arith.constant 0 : index
    %c0_13 = arith.constant 0 : index
    %18 = vector.load %arg6[%c0_12, %c0_13] : memref<600x128xbf16, #tpu.memory_space<vmem>>, vector<600x128xbf16>
    %cst_14 = arith.constant dense<0.000000e+00> : vector<8x128xf32>
    %19 = tpu.matmul %17, %18, %cst_14 {dimension_numbers = #tpu.dot_dimension_numbers<[1], [0], [0], [1], [0, 0, 1, 1], [], []>} : vector<8x600xbf16>, vector<600x128xbf16>, vector<8x128xf32> -> vector<8x128xf32>
    %c0_15 = arith.constant 0 : index
    %c0_16 = arith.constant 0 : index
    %20 = vector.load %arg7[%c0_15, %c0_16] : memref<1x128xf32, #tpu.memory_space<vmem>>, vector<1x128xf32>
    %21 = vector.broadcast %20 : vector<1x128xf32> to vector<8x128xf32>
    %22 = arith.addf %19, %21 : vector<8x128xf32>
    %23 = math.tanh %22 : vector<8x128xf32>
    %c0_17 = arith.constant 0 : index
    %c0_18 = arith.constant 0 : index
    %24 = vector.load %arg8[%c0_17, %c0_18] : memref<8x128xf32, #tpu.memory_space<vmem>>, vector<8x128xf32>
    tpu.vector_store %arg8[%c0_17, %c0_18], %23 {strides = array<i32>} : memref<8x128xf32, #tpu.memory_space<vmem>>, vector<8x128xf32>,
    return
  }
  func.func @transform_0(%arg0: i32) -> (i32, i32) {
    %c0_i32 = arith.constant 0 : i32
    %c0_i32_0 = arith.constant 0 : i32
    return %arg0, %c0_i32 : i32, i32
  }
  func.func @transform_1(%arg0: i32) -> (i32, i32) {
    %c0_i32 = arith.constant 0 : i32
    %c0_i32_0 = arith.constant 0 : i32
    %c0_i32_1 = arith.constant 0 : i32
    return %c0_i32, %c0_i32_0 : i32, i32
  }
  func.func @transform_2(%arg0: i32) -> (i32, i32) {
    %c0_i32 = arith.constant 0 : i32
    %c0_i32_0 = arith.constant 0 : i32
    %c0_i32_1 = arith.constant 0 : i32
    return %c0_i32, %c0_i32_0 : i32, i32
  }
  func.func @transform_3(%arg0: i32) -> (i32, i32) {
    %c0_i32 = arith.constant 0 : i32
    %c0_i32_0 = arith.constant 0 : i32
    %c0_i32_1 = arith.constant 0 : i32
    return %c0_i32, %c0_i32_0 : i32, i32
  }
  func.func @transform_4(%arg0: i32) -> (i32, i32) {
    %c0_i32 = arith.constant 0 : i32
    %c0_i32_0 = arith.constant 0 : i32
    %c0_i32_1 = arith.constant 0 : i32
    return %c0_i32, %c0_i32_0 : i32, i32
  }
  func.func @transform_5(%arg0: i32) -> (i32, i32) {
    %c0_i32 = arith.constant 0 : i32
    %c0_i32_0 = arith.constant 0 : i32
    %c0_i32_1 = arith.constant 0 : i32
    return %c0_i32, %c0_i32_0 : i32, i32
  }
  func.func @transform_6(%arg0: i32) -> (i32, i32) {
    %c0_i32 = arith.constant 0 : i32
    %c0_i32_0 = arith.constant 0 : i32
    %c0_i32_1 = arith.constant 0 : i32
    return %c0_i32, %c0_i32_0 : i32, i32
  }
  func.func @transform_7(%arg0: i32) -> (i32, i32) {
    %c0_i32 = arith.constant 0 : i32
    %c0_i32_0 = arith.constant 0 : i32
    return %arg0, %c0_i32 : i32, i32
  }
}

</mosaic_0001>

<llo_original>
// kernel: tpu_custom_call.1
$region0: #{tpu_custom_call.1}
  #allocation0 [shape = 'u32[]', space=smem, size = 0x4, offset = 0x4, fixed_abs, tag = 'smem constant byte address 0x4 - core index']
  #allocation1 [shape = 'u32[72,128]{1,0:T(1,128)}', space=vmem, size = 0x9000, scoped, tag = 'internal scratch']
  %s0 = inlined_call_operand.hbm [shape: f32[8,24], index: 0, kind: input, shape index: {}]
  %s1 = inlined_call_operand.hbm [shape: bf16[24,800], index: 1, kind: input, shape index: {}]
  %s2 = inlined_call_operand.hbm [shape: f32[1,800], index: 2, kind: input, shape index: {}]
  %s3 = inlined_call_operand.hbm [shape: bf16[800,600], index: 3, kind: input, shape index: {}]
  %s4 = inlined_call_operand.hbm [shape: f32[1,600], index: 4, kind: input, shape index: {}]
  %s5 = inlined_call_operand.hbm [shape: bf16[600,128], index: 5, kind: input, shape index: {}]
  %s6 = inlined_call_operand.vmem [shape: f32[1,128], index: 6, kind: input, shape index: {}]
  %s7 = inlined_call_operand.hbm [shape: f32[8,128], index: 7, kind: output, shape index: {}]
  %s8 = sld [smem:[#allocation0]]
  $region62: #{tpu_custom_call.1} parent=0
    _
  %s10 = ssub.s32 1, %s8
  %s11 = scalar_select 0, %s10, %s8
  $region1: #{tpu_custom_call.1} parent=0
    #allocation2 [shape = 'u8[4096]{0}', space=vmem, size = 0x1000, scoped, tag = 'input window, operand 0, single buffered']
    #allocation3 [shape = 's32[1]{0}', space=sflag, size = 0x4, scoped, tag = 'scoped memory for tpu_custom_call.1']
    #allocation4 [shape = 's32[1]{0}', space=sflag, size = 0x4, scoped, tag = 'scoped memory for tpu_custom_call.1']
    #allocation5 [shape = 'u8[43008]{0}', space=vmem, size = 0xa800, scoped, tag = 'input window, operand 1, single buffered']
    #allocation6 [shape = 's32[1]{0}', space=sflag, size = 0x4, scoped, tag = 'scoped memory for tpu_custom_call.1']
    #allocation7 [shape = 'u8[3584]{0}', space=vmem, size = 0x1000, scoped, tag = 'input window, operand 2, single buffered']
    #allocation8 [shape = 'u8[1024000]{0}', space=vmem, size = 0xfa000, scoped, tag = 'input window, operand 3, single buffered']
    #allocation9 [shape = 's32[1]{0}', space=sflag, size = 0x4, scoped, tag = 'scoped memory for tpu_custom_call.1']
    #allocation10 [shape = 'u8[2560]{0}', space=vmem, size = 0xc00, scoped, tag = 'input window, operand 4, single buffered']
    #allocation11 [shape = 'u8[153600]{0}', space=vmem, size = 0x25800, scoped, tag = 'input window, operand 5, single buffered']
    #allocation12 [shape = 's32[1]{0}', space=sflag, size = 0x4, scoped, tag = 'scoped memory for tpu_custom_call.1']
    #allocation13 [shape = 'u8[4096]{0}', space=vmem, size = 0x1000, scoped, tag = 'output window, operand 0, single buffered']
    %12 = vsyncpa [#allocation3], 0
    %13 = vsyncpa [#allocation6], 0
    %14 = vsyncpa [#allocation9], 0
    %15 = vsyncpa [#allocation12], 0
    %16 = vsyncpa [#allocation4], 0
    // Predicated region
    $region2: #{tpu_custom_call.1} parent=1 // pred_check
      _
    $region3: #{tpu_custom_call.1} parent=1 // pred_check_branch
      %18 = sbr.rel (0) target = $region5
    $region4: #{tpu_custom_call.1} parent=1 // pred_region
      %20 = vsyncadd [#allocation3], 0
      %s22 = sshll.u32 %s0, 4
      %s23 = int_to_ptr.hbm [resolvable:$true] %s22
      %s24 = sshll.u32 [#allocation2], 4
      %s25 = int_to_ptr.vmem [resolvable:$true] %s24
      %27 = dma.hbm_to_vmem [thread:$0]  %s23, 128, %s25, [#allocation3]
    $region5: #{tpu_custom_call.1} parent=1 // pred_fallthru
      _
    // Predicated region
    $region6: #{tpu_custom_call.1} parent=1 // pred_check
      _
    $region7: #{tpu_custom_call.1} parent=1 // pred_check_branch
      %29 = sbr.rel (0) target = $region9
    $region8: #{tpu_custom_call.1} parent=1 // pred_region
      %31 = vsyncadd [#allocation6], 0
      %s32 = sshll.u32 %s1, 4
      %s33 = int_to_ptr.hbm [resolvable:$true] %s32
      %s34 = sshll.u32 [#allocation5], 4
      %s35 = int_to_ptr.vmem [resolvable:$true] %s34
      %40 = dma.hbm_to_vmem [thread:$0]  %s33, 1344, %s35, [#allocation6], 448, 448, 28
    $region9: #{tpu_custom_call.1} parent=1 // pred_fallthru
      _
    // Predicated region
    $region10: #{tpu_custom_call.1} parent=1 // pred_check
      _
    $region11: #{tpu_custom_call.1} parent=1 // pred_check_branch
      %42 = sbr.rel (0) target = $region13
    $region12: #{tpu_custom_call.1} parent=1 // pred_region
      %44 = vsyncadd [#allocation6], 0
      %s46 = sshll.u32 %s2, 4
      %s47 = int_to_ptr.hbm [resolvable:$true] %s46
      %s48 = sshll.u32 [#allocation7], 4
      %s49 = int_to_ptr.vmem [resolvable:$true] %s48
      %51 = dma.hbm_to_vmem [thread:$0]  %s47, 112, %s49, [#allocation6]
    $region13: #{tpu_custom_call.1} parent=1 // pred_fallthru
      _
    // Predicated region
    $region14: #{tpu_custom_call.1} parent=1 // pred_check
      _
    $region15: #{tpu_custom_call.1} parent=1 // pred_check_branch
      %53 = sbr.rel (0) target = $region17
    $region16: #{tpu_custom_call.1} parent=1 // pred_region
      %55 = vsyncadd [#allocation9], 0
      %s56 = sshll.u32 %s3, 4
      %s57 = int_to_ptr.hbm [resolvable:$true] %s56
      %s58 = sshll.u32 [#allocation8], 4
      %s59 = int_to_ptr.vmem [resolvable:$true] %s58
      %64 = dma.hbm_to_vmem [thread:$0]  %s57, 32000, %s59, [#allocation9], 320, 320, 20
    $region17: #{tpu_custom_call.1} parent=1 // pred_fallthru
      _
    // Predicated region
    $region18: #{tpu_custom_call.1} parent=1 // pred_check
      _
    $region19: #{tpu_custom_call.1} parent=1 // pred_check_branch
      %66 = sbr.rel (0) target = $region21
    $region20: #{tpu_custom_call.1} parent=1 // pred_region
      %68 = vsyncadd [#allocation9], 0
      %s70 = sshll.u32 %s4, 4
      %s71 = int_to_ptr.hbm [resolvable:$true] %s70
      %s72 = sshll.u32 [#allocation10], 4
      %s73 = int_to_ptr.vmem [resolvable:$true] %s72
      %75 = dma.hbm_to_vmem [thread:$0]  %s71, 80, %s73, [#allocation9]
    $region21: #{tpu_custom_call.1} parent=1 // pred_fallthru
      _
    // Predicated region
    $region22: #{tpu_custom_call.1} parent=1 // pred_check
      _
    $region23: #{tpu_custom_call.1} parent=1 // pred_check_branch
      %77 = sbr.rel (0) target = $region25
    $region24: #{tpu_custom_call.1} parent=1 // pred_region
      %79 = vsyncadd [#allocation12], 0
      %s80 = sshll.u32 %s5, 4
      %s81 = int_to_ptr.hbm [resolvable:$true] %s80
      %s82 = sshll.u32 [#allocation11], 4
      %s83 = int_to_ptr.vmem [resolvable:$true] %s82
      %88 = dma.hbm_to_vmem [thread:$0]  %s81, 4800, %s83, [#allocation12], 64, 64, 4
    $region25: #{tpu_custom_call.1} parent=1 // pred_fallthru
      _
    // Predicated region
    $region26: #{tpu_custom_call.1} parent=1 // pred_check
      _
    $region27: #{tpu_custom_call.1} parent=1 // pred_check_branch
      %90 = sbr.rel (0) target = $region29
    $region28: #{tpu_custom_call.1} parent=1 // pred_region
      _
    $region29: #{tpu_custom_call.1} parent=1 // pred_fallthru
      _
    // Predicated region
    $region30: #{tpu_custom_call.1} parent=1 // pred_check
      _
    $region31: #{tpu_custom_call.1} parent=1 // pred_check_branch
      %92 = sbr.rel (0) target = $region33
    $region32: #{tpu_custom_call.1} parent=1 // pred_region
      %94 = dma.done [#allocation3], 128
    $region33: #{tpu_custom_call.1} parent=1 // pred_fallthru
      _
    // Predicated region
    $region34: #{tpu_custom_call.1} parent=1 // pred_check
      _
    $region35: #{tpu_custom_call.1} parent=1 // pred_check_branch
      %96 = sbr.rel (0) target = $region37
    $region36: #{tpu_custom_call.1} parent=1 // pred_region
      %98 = dma.done [#allocation6], 1344
    $region37: #{tpu_custom_call.1} parent=1 // pred_fallthru
      _
    // Predicated region
    $region38: #{tpu_custom_call.1} parent=1 // pred_check
      _
    $region39: #{tpu_custom_call.1} parent=1 // pred_check_branch
      %100 = sbr.rel (0) target = $region41
    $region40: #{tpu_custom_call.1} parent=1 // pred_region
      %102 = dma.done [#allocation6], 112
    $region41: #{tpu_custom_call.1} parent=1 // pred_fallthru
      _
    // Predicated region
    $region42: #{tpu_custom_call.1} parent=1 // pred_check
      _
    $region43: #{tpu_custom_call.1} parent=1 // pred_check_branch
      %104 = sbr.rel (0) target = $region45
    $region44: #{tpu_custom_call.1} parent=1 // pred_region
      %106 = dma.done [#allocation9], 32000
    $region45: #{tpu_custom_call.1} parent=1 // pred_fallthru
      _
    // Predicated region
    $region46: #{tpu_custom_call.1} parent=1 // pred_check
      _
    $region47: #{tpu_custom_call.1} parent=1 // pred_check_branch
      %108 = sbr.rel (0) target = $region49
    $region48: #{tpu_custom_call.1} parent=1 // pred_region
      %110 = dma.done [#allocation9], 80
    $region49: #{tpu_custom_call.1} parent=1 // pred_fallthru
      _
    // Predicated region
    $region50: #{tpu_custom_call.1} parent=1 // pred_check
      _
    $region51: #{tpu_custom_call.1} parent=1 // pred_check_branch
      %112 = sbr.rel (0) target = $region53
    $region52: #{tpu_custom_call.1} parent=1 // pred_region
      %114 = dma.done [#allocation12], 4800
    $region53: #{tpu_custom_call.1} parent=1 // pred_fallthru
      _
    %v116 = vld [vmem:[#allocation2] sm:$0xff]
    %v117 = vpack.c.bf16 %v116, %v116
    %v118 = vld [vmem:[#allocation5] sm:$0xff]
    %v119 = vld [vmem:[#allocation5 + $0x8] sm:$0xff]
    %v120 = vld [vmem:[#allocation5 + $0x10] sm:$0xff]
    %v121 = vld [vmem:[#allocation5 + $0x18] sm:$0xf]
    %v122 = vld [vmem:[#allocation5 + $0x1c] sm:$0xff]
    %v123 = vld [vmem:[#allocation5 + $0x24] sm:$0xff]
    %v124 = vld [vmem:[#allocation5 + $0x2c] sm:$0xff]
    %v125 = vld [vmem:[#allocation5 + $0x34] sm:$0xf]
    %v126 = vld [vmem:[#allocation5 + $0x38] sm:$0xff]
    %v127 = vld [vmem:[#allocation5 + $0x40] sm:$0xff]
    %v128 = vld [vmem:[#allocation5 + $0x48] sm:$0xff]
    %v129 = vld [vmem:[#allocation5 + $0x50] sm:$0xf]
    %v130 = vld [vmem:[#allocation7] sm:$0x7f]
    %v132 = vperm.slane %v130, 0
    %v133 = vperm.slane %v130, 1
    %v134 = vperm.slane %v130, 2
    %v135 = vperm.slane %v130, 3
    %v136 = vperm.slane %v130, 4
    %v137 = vperm.slane %v130, 5
    %v138 = vperm.slane %v130, 6
    %v158 = vunpack.c.l.b16 %v118
    %v159 = vunpack.c.h.b16 %v118
    %v160 = vunpack.c.l.b16 %v119
    %v161 = vunpack.c.h.b16 %v119
    %v162 = vunpack.c.l.b16 %v120
    %v163 = vunpack.c.h.b16 %v120
    %v164 = vunpack.c.l.b16 %v121
    %v165 = vunpack.c.l.b16 %v122
    %v166 = vunpack.c.h.b16 %v122
    %v167 = vunpack.c.l.b16 %v123
    %v168 = vunpack.c.h.b16 %v123
    %v169 = vunpack.c.l.b16 %v124
    %v170 = vunpack.c.h.b16 %v124
    %v171 = vunpack.c.l.b16 %v125
    %v172 = vunpack.c.l.b16 %v126
    %v173 = vunpack.c.h.b16 %v126
    %v174 = vunpack.c.l.b16 %v127
    %v175 = vunpack.c.h.b16 %v127
    %v176 = vunpack.c.l.b16 %v128
    %v177 = vunpack.c.h.b16 %v128
    %v178 = vunpack.c.l.b16 %v129
    %v179 = vpack.c.b16 %v165, %v158
    %v180 = vpack.c.b16 %v166, %v159
    %v181 = vpack.c.b16 %v167, %v160
    %v182 = vpack.c.b16 %v168, %v161
    %v183 = vpack.c.b16 %v169, %v162
    %v184 = vpack.c.b16 %v170, %v163
    %v185 = vpack.c.b16 %v171, %v164
    %v186 = vpack.c.b16 %v172, %v172
    %v187 = vpack.c.b16 %v173, %v173
    %v188 = vpack.c.b16 %v174, %v174
    %v189 = vpack.c.b16 %v175, %v175
    %v190 = vpack.c.b16 %v176, %v176
    %v191 = vpack.c.b16 %v177, %v177
    %v192 = vpack.c.b16 %v178, %v178
    %vm200 = vcmask 195584
    %v202 = vsel %vm200, %v117, 0
    %vm204 = vcmask 1043456
    %v206 = vsel %vm204, %v186, 0
    %v209 = vsel %vm204, %v187, 0
    %v212 = vsel %vm204, %v188, 0
    %v215 = vsel %vm204, %v189, 0
    %v218 = vsel %vm204, %v190, 0
    %v221 = vsel %vm204, %v191, 0
    %v224 = vsel %vm204, %v192, 0
    %226 = vmatpush.bf16.msra.mxu0 0
    %227 = vmatpush.bf16.msra.mxu0 0
    %228 = vmatpush.bf16.msra.mxu0 0
    %229 = vmatpush.bf16.msra.mxu0 0
    %230 = vmatpush.bf16.msra.mxu0 0
    %231 = vmatpush.bf16.msra.mxu0 0
    %232 = vmatpush.bf16.msra.mxu0 %v206
    %233 = vmatpush.bf16.msra.mxu0 %v179
    %234 = vmatmul.bf16.gmra.mxu0 %v202
    %v235 = vpop.f32.mrf.mxu0
    %v236 = vadd.f32 %v132, %v235
    %v237 = vpop.f32.mrf.mxu0
    %238 = vdwg.mxu0
    %239 = vmatpush.bf16.msra.mxu0 0
    %240 = vmatpush.bf16.msra.mxu0 0
    %241 = vmatpush.bf16.msra.mxu0 0
    %242 = vmatpush.bf16.msra.mxu0 0
    %243 = vmatpush.bf16.msra.mxu0 0
    %244 = vmatpush.bf16.msra.mxu0 0
    %245 = vmatpush.bf16.msra.mxu0 %v209
    %246 = vmatpush.bf16.msra.mxu0 %v180
    %247 = vmatmul.bf16.gmra.mxu0 %v202
    %v248 = vpop.f32.mrf.mxu0
    %v249 = vadd.f32 %v133, %v248
    %v250 = vpop.f32.mrf.mxu0
    %251 = vdwg.mxu0
    %252 = vmatpush.bf16.msra.mxu0 0
    %253 = vmatpush.bf16.msra.mxu0 0
    %254 = vmatpush.bf16.msra.mxu0 0
    %255 = vmatpush.bf16.msra.mxu0 0
    %256 = vmatpush.bf16.msra.mxu0 0
    %257 = vmatpush.bf16.msra.mxu0 0
    %258 = vmatpush.bf16.msra.mxu0 %v212
    %259 = vmatpush.bf16.msra.mxu0 %v181
    %260 = vmatmul.bf16.gmra.mxu0 %v202
    %v261 = vpop.f32.mrf.mxu0
    %v262 = vadd.f32 %v134, %v261
    %v263 = vpop.f32.mrf.mxu0
    %264 = vdwg.mxu0
    %265 = vmatpush.bf16.msra.mxu0 0
    %266 = vmatpush.bf16.msra.mxu0 0
    %267 = vmatpush.bf16.msra.mxu0 0
    %268 = vmatpush.bf16.msra.mxu0 0
    %269 = vmatpush.bf16.msra.mxu0 0
    %270 = vmatpush.bf16.msra.mxu0 0
    %271 = vmatpush.bf16.msra.mxu0 %v215
    %272 = vmatpush.bf16.msra.mxu0 %v182
    %273 = vmatmul.bf16.gmra.mxu0 %v202
    %v274 = vpop.f32.mrf.mxu0
    %v275 = vadd.f32 %v135, %v274
    %v276 = vpop.f32.mrf.mxu0
    %277 = vdwg.mxu0
    %278 = vmatpush.bf16.msra.mxu0 0
    %279 = vmatpush.bf16.msra.mxu0 0
    %280 = vmatpush.bf16.msra.mxu0 0
    %281 = vmatpush.bf16.msra.mxu0 0
    %282 = vmatpush.bf16.msra.mxu0 0
    %283 = vmatpush.bf16.msra.mxu0 0
    %284 = vmatpush.bf16.msra.mxu0 %v218
    %285 = vmatpush.bf16.msra.mxu0 %v183
    %286 = vmatmul.bf16.gmra.mxu0 %v202
    %v287 = vpop.f32.mrf.mxu0
    %v288 = vadd.f32 %v136, %v287
    %v289 = vpop.f32.mrf.mxu0
    %290 = vdwg.mxu0
    %291 = vmatpush.bf16.msra.mxu0 0
    %292 = vmatpush.bf16.msra.mxu0 0
    %293 = vmatpush.bf16.msra.mxu0 0
    %294 = vmatpush.bf16.msra.mxu0 0
    %295 = vmatpush.bf16.msra.mxu0 0
    %296 = vmatpush.bf16.msra.mxu0 0
    %297 = vmatpush.bf16.msra.mxu0 %v221
    %298 = vmatpush.bf16.msra.mxu0 %v184
    %299 = vmatmul.bf16.gmra.mxu0 %v202
    %v300 = vpop.f32.mrf.mxu0
    %v301 = vadd.f32 %v137, %v300
    %v302 = vpop.f32.mrf.mxu0
    %303 = vdwg.mxu0
    %304 = vmatpush.bf16.msra.mxu0 0
    %305 = vmatpush.bf16.msra.mxu0 0
    %306 = vmatpush.bf16.msra.mxu0 0
    %307 = vmatpush.bf16.msra.mxu0 0
    %308 = vmatpush.bf16.msra.mxu0 0
    %309 = vmatpush.bf16.msra.mxu0 0
    %310 = vmatpush.bf16.msra.mxu0 %v224
    %311 = vmatpush.bf16.msra.mxu0 %v185
    %312 = vmatmul.bf16.gmra.mxu0 %v202
    %v313 = vpop.f32.mrf.mxu0
    %v314 = vadd.f32 %v138, %v313
    %v315 = vpop.f32.mrf.mxu0
    %316 = vdwg.mxu0
    %v317 = vmax.f32 %v236, 0.0
    %v318 = vmax.f32 %v249, 0.0
    %v319 = vmax.f32 %v262, 0.0
    %v320 = vmax.f32 %v275, 0.0
    %v321 = vmax.f32 %v288, 0.0
    %v322 = vmax.f32 %v301, 0.0
    %v323 = vmax.f32 %v314, 0.0
    %v324 = vpack.c.bf16 %v317, %v317
    %v325 = vpack.c.bf16 %v318, %v318
    %v326 = vpack.c.bf16 %v319, %v319
    %v327 = vpack.c.bf16 %v320, %v320
    %v328 = vpack.c.bf16 %v321, %v321
    %v329 = vpack.c.bf16 %v322, %v322
    %v330 = vpack.c.bf16 %v323, %v323
    %v331 = vld [vmem:[#allocation8] sm:$0xff]
    %v332 = vld [vmem:[#allocation8 + $0x8] sm:$0xff]
    %v333 = vld [vmem:[#allocation8 + $0x10] sm:$0xf]
    %v334 = vld [vmem:[#allocation8 + $0x14] sm:$0xff]
    %v335 = vld [vmem:[#allocation8 + $0x1c] sm:$0xff]
    %v336 = vld [vmem:[#allocation8 + $0x24] sm:$0xf]
    %v337 = vld [vmem:[#allocation8 + $0x28] sm:$0xff]
    %v338 = vld [vmem:[#allocation8 + $0x30] sm:$0xff]
    %v339 = vld [vmem:[#allocation8 + $0x38] sm:$0xf]
    %v340 = vld [vmem:[#allocation8 + $0x3c] sm:$0xff]
    %v341 = vld [vmem:[#allocation8 + $0x44] sm:$0xff]
    %v342 = vld [vmem:[#allocation8 + $0x4c] sm:$0xf]
    %v343 = vld [vmem:[#allocation8 + $0x50] sm:$0xff]
    %v344 = vld [vmem:[#allocation8 + $0x58] sm:$0xff]
    %v345 = vld [vmem:[#allocation8 + $0x60] sm:$0xf]
    %v346 = vld [vmem:[#allocation8 + $0x64] sm:$0xff]
    %v347 = vld [vmem:[#allocation8 + $0x6c] sm:$0xff]
    %v348 = vld [vmem:[#allocation8 + $0x74] sm:$0xf]
    %v349 = vld [vmem:[#allocation8 + $0x78] sm:$0xff]
    %v350 = vld [vmem:[#allocation8 + $0x80] sm:$0xff]
    %v351 = vld [vmem:[#allocation8 + $0x88] sm:$0xf]
    %v352 = vld [vmem:[#allocation8 + $0x8c] sm:$0xff]
    %v353 = vld [vmem:[#allocation8 + $0x94] sm:$0xff]
    %v354 = vld [vmem:[#allocation8 + $0x9c] sm:$0xf]
    %v355 = vld [vmem:[#allocation8 + $0xa0] sm:$0xff]
    %v356 = vld [vmem:[#allocation8 + $0xa8] sm:$0xff]
    %v357 = vld [vmem:[#allocation8 + $0xb0] sm:$0xf]
    %v358 = vld [vmem:[#allocation8 + $0xb4] sm:$0xff]
    %v359 = vld [vmem:[#allocation8 + $0xbc] sm:$0xff]
    %v360 = vld [vmem:[#allocation8 + $0xc4] sm:$0xf]
    %v361 = vld [vmem:[#allocation8 + $0xc8] sm:$0xff]
    %v362 = vld [vmem:[#allocation8 + $0xd0] sm:$0xff]
    %v363 = vld [vmem:[#allocation8 + $0xd8] sm:$0xf]
    %v364 = vld [vmem:[#allocation8 + $0xdc] sm:$0xff]
    %v365 = vld [vmem:[#allocation8 + $0xe4] sm:$0xff]
    %v366 = vld [vmem:[#allocation8 + $0xec] sm:$0xf]
    %v367 = vld [vmem:[#allocation8 + $0xf0] sm:$0xff]
    %v368 = vld [vmem:[#allocation8 + $0xf8] sm:$0xff]
    %v369 = vld [vmem:[#allocation8 + $0x100] sm:$0xf]
    %v370 = vld [vmem:[#allocation8 + $0x104] sm:$0xff]
    %v371 = vld [vmem:[#allocation8 + $0x10c] sm:$0xff]
    %v372 = vld [vmem:[#allocation8 + $0x114] sm:$0xf]
    %v373 = vld [vmem:[#allocation8 + $0x118] sm:$0xff]
    %v374 = vld [vmem:[#allocation8 + $0x120] sm:$0xff]
    %v375 = vld [vmem:[#allocation8 + $0x128] sm:$0xf]
    %v376 = vld [vmem:[#allocation8 + $0x12c] sm:$0xff]
    %v377 = vld [vmem:[#allocation8 + $0x134] sm:$0xff]
    %v378 = vld [vmem:[#allocation8 + $0x13c] sm:$0xf]
    %v379 = vld [vmem:[#allocation8 + $0x140] sm:$0xff]
    %v380 = vld [vmem:[#allocation8 + $0x148] sm:$0xff]
    %v381 = vld [vmem:[#allocation8 + $0x150] sm:$0xf]
    %v382 = vld [vmem:[#allocation8 + $0x154] sm:$0xff]
    %v383 = vld [vmem:[#allocation8 + $0x15c] sm:$0xff]
    %v384 = vld [vmem:[#allocation8 + $0x164] sm:$0xf]
    %v385 = vld [vmem:[#allocation8 + $0x168] sm:$0xff]
    %v386 = vld [vmem:[#allocation8 + $0x170] sm:$0xff]
    %v387 = vld [vmem:[#allocation8 + $0x178] sm:$0xf]
    %v388 = vld [vmem:[#allocation8 + $0x17c] sm:$0xff]
    %v389 = vld [vmem:[#allocation8 + $0x184] sm:$0xff]
    %v390 = vld [vmem:[#allocation8 + $0x18c] sm:$0xf]
    %v391 = vld [vmem:[#allocation8 + $0x190] sm:$0xff]
    %v392 = vld [vmem:[#allocation8 + $0x198] sm:$0xff]
    %v393 = vld [vmem:[#allocation8 + $0x1a0] sm:$0xf]
    %v394 = vld [vmem:[#allocation8 + $0x1a4] sm:$0xff]
    %v395 = vld [vmem:[#allocation8 + $0x1ac] sm:$0xff]
    %v396 = vld [vmem:[#allocation8 + $0x1b4] sm:$0xf]
    %v397 = vld [vmem:[#allocation8 + $0x1b8] sm:$0xff]
    %v398 = vld [vmem:[#allocation8 + $0x1c0] sm:$0xff]
    %v399 = vld [vmem:[#allocation8 + $0x1c8] sm:$0xf]
    %v400 = vld [vmem:[#allocation8 + $0x1cc] sm:$0xff]
    %v401 = vld [vmem:[#allocation8 + $0x1d4] sm:$0xff]
    %v402 = vld [vmem:[#allocation8 + $0x1dc] sm:$0xf]
    %v403 = vld [vmem:[#allocation8 + $0x1e0] sm:$0xff]
    %v404 = vld [vmem:[#allocation8 + $0x1e8] sm:$0xff]
    %v405 = vld [vmem:[#allocation8 + $0x1f0] sm:$0xf]
    %v406 = vld [vmem:[#allocation8 + $0x1f4] sm:$0xff]
    %v407 = vld [vmem:[#allocation8 + $0x1fc] sm:$0xff]
    %v408 = vld [vmem:[#allocation8 + $0x204] sm:$0xf]
    %v409 = vld [vmem:[#allocation8 + $0x208] sm:$0xff]
    %v410 = vld [vmem:[#allocation8 + $0x210] sm:$0xff]
    %v411 = vld [vmem:[#allocation8 + $0x218] sm:$0xf]
    %v412 = vld [vmem:[#allocation8 + $0x21c] sm:$0xff]
    %v413 = vld [vmem:[#allocation8 + $0x224] sm:$0xff]
    %v414 = vld [vmem:[#allocation8 + $0x22c] sm:$0xf]
    %v415 = vld [vmem:[#allocation8 + $0x230] sm:$0xff]
    %v416 = vld [vmem:[#allocation8 + $0x238] sm:$0xff]
    %v417 = vld [vmem:[#allocation8 + $0x240] sm:$0xf]
    %v418 = vld [vmem:[#allocation8 + $0x244] sm:$0xff]
    %v419 = vld [vmem:[#allocation8 + $0x24c] sm:$0xff]
    %v420 = vld [vmem:[#allocation8 + $0x254] sm:$0xf]
    %v421 = vld [vmem:[#allocation8 + $0x258] sm:$0xff]
    %v422 = vld [vmem:[#allocation8 + $0x260] sm:$0xff]
    %v423 = vld [vmem:[#allocation8 + $0x268] sm:$0xf]
    %v424 = vld [vmem:[#allocation8 + $0x26c] sm:$0xff]
    %v425 = vld [vmem:[#allocation8 + $0x274] sm:$0xff]
    %v426 = vld [vmem:[#allocation8 + $0x27c] sm:$0xf]
    %v427 = vld [vmem:[#allocation8 + $0x280] sm:$0xff]
    %v428 = vld [vmem:[#allocation8 + $0x288] sm:$0xff]
    %v429 = vld [vmem:[#allocation8 + $0x290] sm:$0xf]
    %v430 = vld [vmem:[#allocation8 + $0x294] sm:$0xff]
    %v431 = vld [vmem:[#allocation8 + $0x29c] sm:$0xff]
    %v432 = vld [vmem:[#allocation8 + $0x2a4] sm:$0xf]
    %v433 = vld [vmem:[#allocation8 + $0x2a8] sm:$0xff]
    %v434 = vld [vmem:[#allocation8 + $0x2b0] sm:$0xff]
    %v435 = vld [vmem:[#allocation8 + $0x2b8] sm:$0xf]
    %v436 = vld [vmem:[#allocation8 + $0x2bc] sm:$0xff]
    %v437 = vld [vmem:[#allocation8 + $0x2c4] sm:$0xff]
    %v438 = vld [vmem:[#allocation8 + $0x2cc] sm:$0xf]
    %v439 = vld [vmem:[#allocation8 + $0x2d0] sm:$0xff]
    %v440 = vld [vmem:[#allocation8 + $0x2d8] sm:$0xff]
    %v441 = vld [vmem:[#allocation8 + $0x2e0] sm:$0xf]
    %v442 = vld [vmem:[#allocation8 + $0x2e4] sm:$0xff]
    %v443 = vld [vmem:[#allocation8 + $0x2ec] sm:$0xff]
    %v444 = vld [vmem:[#allocation8 + $0x2f4] sm:$0xf]
    %v445 = vld [vmem:[#allocation8 + $0x2f8] sm:$0xff]
    %v446 = vld [vmem:[#allocation8 + $0x300] sm:$0xff]
    %v447 = vld [vmem:[#allocation8 + $0x308] sm:$0xf]
    %v448 = vld [vmem:[#allocation8 + $0x30c] sm:$0xff]
    %v449 = vld [vmem:[#allocation8 + $0x314] sm:$0xff]
    %v450 = vld [vmem:[#allocation8 + $0x31c] sm:$0xf]
    %v451 = vld [vmem:[#allocation8 + $0x320] sm:$0xff]
    %v452 = vld [vmem:[#allocation8 + $0x328] sm:$0xff]
    %v453 = vld [vmem:[#allocation8 + $0x330] sm:$0xf]
    %v454 = vld [vmem:[#allocation8 + $0x334] sm:$0xff]
    %v455 = vld [vmem:[#allocation8 + $0x33c] sm:$0xff]
    %v456 = vld [vmem:[#allocation8 + $0x344] sm:$0xf]
    %v457 = vld [vmem:[#allocation8 + $0x348] sm:$0xff]
    %v458 = vld [vmem:[#allocation8 + $0x350] sm:$0xff]
    %v459 = vld [vmem:[#allocation8 + $0x358] sm:$0xf]
    %v460 = vld [vmem:[#allocation8 + $0x35c] sm:$0xff]
    %v461 = vld [vmem:[#allocation8 + $0x364] sm:$0xff]
    %v462 = vld [vmem:[#allocation8 + $0x36c] sm:$0xf]
    %v463 = vld [vmem:[#allocation8 + $0x370] sm:$0xff]
    %v464 = vld [vmem:[#allocation8 + $0x378] sm:$0xff]
    %v465 = vld [vmem:[#allocation8 + $0x380] sm:$0xf]
    %v466 = vld [vmem:[#allocation8 + $0x384] sm:$0xff]
    %v467 = vld [vmem:[#allocation8 + $0x38c] sm:$0xff]
    %v468 = vld [vmem:[#allocation8 + $0x394] sm:$0xf]
    %v469 = vld [vmem:[#allocation8 + $0x398] sm:$0xff]
    %v470 = vld [vmem:[#allocation8 + $0x3a0] sm:$0xff]
    %v471 = vld [vmem:[#allocation8 + $0x3a8] sm:$0xf]
    %v472 = vld [vmem:[#allocation8 + $0x3ac] sm:$0xff]
    %v473 = vld [vmem:[#allocation8 + $0x3b4] sm:$0xff]
    %v474 = vld [vmem:[#allocation8 + $0x3bc] sm:$0xf]
    %v475 = vld [vmem:[#allocation8 + $0x3c0] sm:$0xff]
    %v476 = vld [vmem:[#allocation8 + $0x3c8] sm:$0xff]
    %v477 = vld [vmem:[#allocation8 + $0x3d0] sm:$0xf]
    %v478 = vld [vmem:[#allocation8 + $0x3d4] sm:$0xff]
    %v479 = vld [vmem:[#allocation8 + $0x3dc] sm:$0xff]
    %v480 = vld [vmem:[#allocation8 + $0x3e4] sm:$0xf]
    %v481 = vld [vmem:[#allocation8 + $0x3e8] sm:$0xff]
    %v482 = vld [vmem:[#allocation8 + $0x3f0] sm:$0xff]
    %v483 = vld [vmem:[#allocation8 + $0x3f8] sm:$0xf]
    %v484 = vld [vmem:[#allocation8 + $0x3fc] sm:$0xff]
    %v485 = vld [vmem:[#allocation8 + $0x404] sm:$0xff]
    %v486 = vld [vmem:[#allocation8 + $0x40c] sm:$0xf]
    %v487 = vld [vmem:[#allocation8 + $0x410] sm:$0xff]
    %v488 = vld [vmem:[#allocation8 + $0x418] sm:$0xff]
    %v489 = vld [vmem:[#allocation8 + $0x420] sm:$0xf]
    %v490 = vld [vmem:[#allocation8 + $0x424] sm:$0xff]
    %v491 = vld [vmem:[#allocation8 + $0x42c] sm:$0xff]
    %v492 = vld [vmem:[#allocation8 + $0x434] sm:$0xf]
    %v493 = vld [vmem:[#allocation8 + $0x438] sm:$0xff]
    %v494 = vld [vmem:[#allocation8 + $0x440] sm:$0xff]
    %v495 = vld [vmem:[#allocation8 + $0x448] sm:$0xf]
    %v496 = vld [vmem:[#allocation8 + $0x44c] sm:$0xff]
    %v497 = vld [vmem:[#allocation8 + $0x454] sm:$0xff]
    %v498 = vld [vmem:[#allocation8 + $0x45c] sm:$0xf]
    %v499 = vld [vmem:[#allocation8 + $0x460] sm:$0xff]
    %v500 = vld [vmem:[#allocation8 + $0x468] sm:$0xff]
    %v501 = vld [vmem:[#allocation8 + $0x470] sm:$0xf]
    %v502 = vld [vmem:[#allocation8 + $0x474] sm:$0xff]
    %v503 = vld [vmem:[#allocation8 + $0x47c] sm:$0xff]
    %v504 = vld [vmem:[#allocation8 + $0x484] sm:$0xf]
    %v505 = vld [vmem:[#allocation8 + $0x488] sm:$0xff]
    %v506 = vld [vmem:[#allocation8 + $0x490] sm:$0xff]
    %v507 = vld [vmem:[#allocation8 + $0x498] sm:$0xf]
    %v508 = vld [vmem:[#allocation8 + $0x49c] sm:$0xff]
    %v509 = vld [vmem:[#allocation8 + $0x4a4] sm:$0xff]
    %v510 = vld [vmem:[#allocation8 + $0x4ac] sm:$0xf]
    %v511 = vld [vmem:[#allocation8 + $0x4b0] sm:$0xff]
    %v512 = vld [vmem:[#allocation8 + $0x4b8] sm:$0xff]
    %v513 = vld [vmem:[#allocation8 + $0x4c0] sm:$0xf]
    %v514 = vld [vmem:[#allocation8 + $0x4c4] sm:$0xff]
    %v515 = vld [vmem:[#allocation8 + $0x4cc] sm:$0xff]
    %v516 = vld [vmem:[#allocation8 + $0x4d4] sm:$0xf]
    %v517 = vld [vmem:[#allocation8 + $0x4d8] sm:$0xff]
    %v518 = vld [vmem:[#allocation8 + $0x4e0] sm:$0xff]
    %v519 = vld [vmem:[#allocation8 + $0x4e8] sm:$0xf]
    %v520 = vld [vmem:[#allocation8 + $0x4ec] sm:$0xff]
    %v521 = vld [vmem:[#allocation8 + $0x4f4] sm:$0xff]
    %v522 = vld [vmem:[#allocation8 + $0x4fc] sm:$0xf]
    %v523 = vld [vmem:[#allocation8 + $0x500] sm:$0xff]
    %v524 = vld [vmem:[#allocation8 + $0x508] sm:$0xff]
    %v525 = vld [vmem:[#allocation8 + $0x510] sm:$0xf]
    %v526 = vld [vmem:[#allocation8 + $0x514] sm:$0xff]
    %v527 = vld [vmem:[#allocation8 + $0x51c] sm:$0xff]
    %v528 = vld [vmem:[#allocation8 + $0x524] sm:$0xf]
    %v529 = vld [vmem:[#allocation8 + $0x528] sm:$0xff]
    %v530 = vld [vmem:[#allocation8 + $0x530] sm:$0xff]
    %v531 = vld [vmem:[#allocation8 + $0x538] sm:$0xf]
    %v532 = vld [vmem:[#allocation8 + $0x53c] sm:$0xff]
    %v533 = vld [vmem:[#allocation8 + $0x544] sm:$0xff]
    %v534 = vld [vmem:[#allocation8 + $0x54c] sm:$0xf]
    %v535 = vld [vmem:[#allocation8 + $0x550] sm:$0xff]
    %v536 = vld [vmem:[#allocation8 + $0x558] sm:$0xff]
    %v537 = vld [vmem:[#allocation8 + $0x560] sm:$0xf]
    %v538 = vld [vmem:[#allocation8 + $0x564] sm:$0xff]
    %v539 = vld [vmem:[#allocation8 + $0x56c] sm:$0xff]
    %v540 = vld [vmem:[#allocation8 + $0x574] sm:$0xf]
    %v541 = vld [vmem:[#allocation8 + $0x578] sm:$0xff]
    %v542 = vld [vmem:[#allocation8 + $0x580] sm:$0xff]
    %v543 = vld [vmem:[#allocation8 + $0x588] sm:$0xf]
    %v544 = vld [vmem:[#allocation8 + $0x58c] sm:$0xff]
    %v545 = vld [vmem:[#allocation8 + $0x594] sm:$0xff]
    %v546 = vld [vmem:[#allocation8 + $0x59c] sm:$0xf]
    %v547 = vld [vmem:[#allocation8 + $0x5a0] sm:$0xff]
    %v548 = vld [vmem:[#allocation8 + $0x5a8] sm:$0xff]
    %v549 = vld [vmem:[#allocation8 + $0x5b0] sm:$0xf]
    %v550 = vld [vmem:[#allocation8 + $0x5b4] sm:$0xff]
    %v551 = vld [vmem:[#allocation8 + $0x5bc] sm:$0xff]
    %v552 = vld [vmem:[#allocation8 + $0x5c4] sm:$0xf]
    %v553 = vld [vmem:[#allocation8 + $0x5c8] sm:$0xff]
    %v554 = vld [vmem:[#allocation8 + $0x5d0] sm:$0xff]
    %v555 = vld [vmem:[#allocation8 + $0x5d8] sm:$0xf]
    %v556 = vld [vmem:[#allocation8 + $0x5dc] sm:$0xff]
    %v557 = vld [vmem:[#allocation8 + $0x5e4] sm:$0xff]
    %v558 = vld [vmem:[#allocation8 + $0x5ec] sm:$0xf]
    %v559 = vld [vmem:[#allocation8 + $0x5f0] sm:$0xff]
    %v560 = vld [vmem:[#allocation8 + $0x5f8] sm:$0xff]
    %v561 = vld [vmem:[#allocation8 + $0x600] sm:$0xf]
    %v562 = vld [vmem:[#allocation8 + $0x604] sm:$0xff]
    %v563 = vld [vmem:[#allocation8 + $0x60c] sm:$0xff]
    %v564 = vld [vmem:[#allocation8 + $0x614] sm:$0xf]
    %v565 = vld [vmem:[#allocation8 + $0x618] sm:$0xff]
    %v566 = vld [vmem:[#allocation8 + $0x620] sm:$0xff]
    %v567 = vld [vmem:[#allocation8 + $0x628] sm:$0xf]
    %v568 = vld [vmem:[#allocation8 + $0x62c] sm:$0xff]
    %v569 = vld [vmem:[#allocation8 + $0x634] sm:$0xff]
    %v570 = vld [vmem:[#allocation8 + $0x63c] sm:$0xf]
    %v571 = vld [vmem:[#allocation8 + $0x640] sm:$0xff]
    %v572 = vld [vmem:[#allocation8 + $0x648] sm:$0xff]
    %v573 = vld [vmem:[#allocation8 + $0x650] sm:$0xf]
    %v574 = vld [vmem:[#allocation8 + $0x654] sm:$0xff]
    %v575 = vld [vmem:[#allocation8 + $0x65c] sm:$0xff]
    %v576 = vld [vmem:[#allocation8 + $0x664] sm:$0xf]
    %v577 = vld [vmem:[#allocation8 + $0x668] sm:$0xff]
    %v578 = vld [vmem:[#allocation8 + $0x670] sm:$0xff]
    %v579 = vld [vmem:[#allocation8 + $0x678] sm:$0xf]
    %v580 = vld [vmem:[#allocation8 + $0x67c] sm:$0xff]
    %v581 = vld [vmem:[#allocation8 + $0x684] sm:$0xff]
    %v582 = vld [vmem:[#allocation8 + $0x68c] sm:$0xf]
    %v583 = vld [vmem:[#allocation8 + $0x690] sm:$0xff]
    %v584 = vld [vmem:[#allocation8 + $0x698] sm:$0xff]
    %v585 = vld [vmem:[#allocation8 + $0x6a0] sm:$0xf]
    %v586 = vld [vmem:[#allocation8 + $0x6a4] sm:$0xff]
    %v587 = vld [vmem:[#allocation8 + $0x6ac] sm:$0xff]
    %v588 = vld [vmem:[#allocation8 + $0x6b4] sm:$0xf]
    %v589 = vld [vmem:[#allocation8 + $0x6b8] sm:$0xff]
    %v590 = vld [vmem:[#allocation8 + $0x6c0] sm:$0xff]
    %v591 = vld [vmem:[#allocation8 + $0x6c8] sm:$0xf]
    %v592 = vld [vmem:[#allocation8 + $0x6cc] sm:$0xff]
    %v593 = vld [vmem:[#allocation8 + $0x6d4] sm:$0xff]
    %v594 = vld [vmem:[#allocation8 + $0x6dc] sm:$0xf]
    %v595 = vld [vmem:[#allocation8 + $0x6e0] sm:$0xff]
    %v596 = vld [vmem:[#allocation8 + $0x6e8] sm:$0xff]
    %v597 = vld [vmem:[#allocation8 + $0x6f0] sm:$0xf]
    %v598 = vld [vmem:[#allocation8 + $0x6f4] sm:$0xff]
    %v599 = vld [vmem:[#allocation8 + $0x6fc] sm:$0xff]
    %v600 = vld [vmem:[#allocation8 + $0x704] sm:$0xf]
    %v601 = vld [vmem:[#allocation8 + $0x708] sm:$0xff]
    %v602 = vld [vmem:[#allocation8 + $0x710] sm:$0xff]
    %v603 = vld [vmem:[#allocation8 + $0x718] sm:$0xf]
    %v604 = vld [vmem:[#allocation8 + $0x71c] sm:$0xff]
    %v605 = vld [vmem:[#allocation8 + $0x724] sm:$0xff]
    %v606 = vld [vmem:[#allocation8 + $0x72c] sm:$0xf]
    %v607 = vld [vmem:[#allocation8 + $0x730] sm:$0xff]
    %v608 = vld [vmem:[#allocation8 + $0x738] sm:$0xff]
    %v609 = vld [vmem:[#allocation8 + $0x740] sm:$0xf]
    %v610 = vld [vmem:[#allocation8 + $0x744] sm:$0xff]
    %v611 = vld [vmem:[#allocation8 + $0x74c] sm:$0xff]
    %v612 = vld [vmem:[#allocation8 + $0x754] sm:$0xf]
    %v613 = vld [vmem:[#allocation8 + $0x758] sm:$0xff]
    %v614 = vld [vmem:[#allocation8 + $0x760] sm:$0xff]
    %v615 = vld [vmem:[#allocation8 + $0x768] sm:$0xf]
    %v616 = vld [vmem:[#allocation8 + $0x76c] sm:$0xff]
    %v617 = vld [vmem:[#allocation8 + $0x774] sm:$0xff]
    %v618 = vld [vmem:[#allocation8 + $0x77c] sm:$0xf]
    %v619 = vld [vmem:[#allocation8 + $0x780] sm:$0xff]
    %v620 = vld [vmem:[#allocation8 + $0x788] sm:$0xff]
    %v621 = vld [vmem:[#allocation8 + $0x790] sm:$0xf]
    %v622 = vld [vmem:[#allocation8 + $0x794] sm:$0xff]
    %v623 = vld [vmem:[#allocation8 + $0x79c] sm:$0xff]
    %v624 = vld [vmem:[#allocation8 + $0x7a4] sm:$0xf]
    %v625 = vld [vmem:[#allocation8 + $0x7a8] sm:$0xff]
    %v626 = vld [vmem:[#allocation8 + $0x7b0] sm:$0xff]
    %v627 = vld [vmem:[#allocation8 + $0x7b8] sm:$0xf]
    %v628 = vld [vmem:[#allocation8 + $0x7bc] sm:$0xff]
    %v629 = vld [vmem:[#allocation8 + $0x7c4] sm:$0xff]
    %v630 = vld [vmem:[#allocation8 + $0x7cc] sm:$0xf]
    %v631 = vld [vmem:[#allocation10] sm:$0x1f]
    %v633 = vperm.slane %v631, 0
    %v634 = vperm.slane %v631, 1
    %v635 = vperm.slane %v631, 2
    %v636 = vperm.slane %v631, 3
    %v637 = vperm.slane %v631, 4
    %v943 = vunpack.c.l.b16 %v331
    %v944 = vunpack.c.h.b16 %v331
    %v945 = vunpack.c.l.b16 %v332
    %v946 = vunpack.c.h.b16 %v332
    %v947 = vunpack.c.l.b16 %v333
    %v948 = vunpack.c.l.b16 %v334
    %v949 = vunpack.c.h.b16 %v334
    %v950 = vunpack.c.l.b16 %v335
    %v951 = vunpack.c.h.b16 %v335
    %v952 = vunpack.c.l.b16 %v336
    %v953 = vunpack.c.l.b16 %v337
    %v954 = vunpack.c.h.b16 %v337
    %v955 = vunpack.c.l.b16 %v338
    %v956 = vunpack.c.h.b16 %v338
    %v957 = vunpack.c.l.b16 %v339
    %v958 = vunpack.c.l.b16 %v340
    %v959 = vunpack.c.h.b16 %v340
    %v960 = vunpack.c.l.b16 %v341
    %v961 = vunpack.c.h.b16 %v341
    %v962 = vunpack.c.l.b16 %v342
    %v963 = vunpack.c.l.b16 %v343
    %v964 = vunpack.c.h.b16 %v343
    %v965 = vunpack.c.l.b16 %v344
    %v966 = vunpack.c.h.b16 %v344
    %v967 = vunpack.c.l.b16 %v345
    %v968 = vunpack.c.l.b16 %v346
    %v969 = vunpack.c.h.b16 %v346
    %v970 = vunpack.c.l.b16 %v347
    %v971 = vunpack.c.h.b16 %v347
    %v972 = vunpack.c.l.b16 %v348
    %v973 = vunpack.c.l.b16 %v349
    %v974 = vunpack.c.h.b16 %v349
    %v975 = vunpack.c.l.b16 %v350
    %v976 = vunpack.c.h.b16 %v350
    %v977 = vunpack.c.l.b16 %v351
    %v978 = vunpack.c.l.b16 %v352
    %v979 = vunpack.c.h.b16 %v352
    %v980 = vunpack.c.l.b16 %v353
    %v981 = vunpack.c.h.b16 %v353
    %v982 = vunpack.c.l.b16 %v354
    %v983 = vunpack.c.l.b16 %v355
    %v984 = vunpack.c.h.b16 %v355
    %v985 = vunpack.c.l.b16 %v356
    %v986 = vunpack.c.h.b16 %v356
    %v987 = vunpack.c.l.b16 %v357
    %v988 = vunpack.c.l.b16 %v358
    %v989 = vunpack.c.h.b16 %v358
    %v990 = vunpack.c.l.b16 %v359
    %v991 = vunpack.c.h.b16 %v359
    %v992 = vunpack.c.l.b16 %v360
    %v993 = vunpack.c.l.b16 %v361
    %v994 = vunpack.c.h.b16 %v361
    %v995 = vunpack.c.l.b16 %v362
    %v996 = vunpack.c.h.b16 %v362
    %v997 = vunpack.c.l.b16 %v363
    %v998 = vunpack.c.l.b16 %v364
    %v999 = vunpack.c.h.b16 %v364
    %v1000 = vunpack.c.l.b16 %v365
    %v1001 = vunpack.c.h.b16 %v365
    %v1002 = vunpack.c.l.b16 %v366
    %v1003 = vunpack.c.l.b16 %v367
    %v1004 = vunpack.c.h.b16 %v367
    %v1005 = vunpack.c.l.b16 %v368
    %v1006 = vunpack.c.h.b16 %v368
    %v1007 = vunpack.c.l.b16 %v369
    %v1008 = vunpack.c.l.b16 %v370
    %v1009 = vunpack.c.h.b16 %v370
    %v1010 = vunpack.c.l.b16 %v371
    %v1011 = vunpack.c.h.b16 %v371
    %v1012 = vunpack.c.l.b16 %v372
    %v1013 = vunpack.c.l.b16 %v373
    %v1014 = vunpack.c.h.b16 %v373
    %v1015 = vunpack.c.l.b16 %v374
    %v1016 = vunpack.c.h.b16 %v374
    %v1017 = vunpack.c.l.b16 %v375
    %v1018 = vunpack.c.l.b16 %v376
    %v1019 = vunpack.c.h.b16 %v376
    %v1020 = vunpack.c.l.b16 %v377
    %v1021 = vunpack.c.h.b16 %v377
    %v1022 = vunpack.c.l.b16 %v378
    %v1023 = vunpack.c.l.b16 %v379
    %v1024 = vunpack.c.h.b16 %v379
    %v1025 = vunpack.c.l.b16 %v380
    %v1026 = vunpack.c.h.b16 %v380
    %v1027 = vunpack.c.l.b16 %v381
    %v1028 = vunpack.c.l.b16 %v382
    %v1029 = vunpack.c.h.b16 %v382
    %v1030 = vunpack.c.l.b16 %v383
    %v1031 = vunpack.c.h.b16 %v383
    %v1032 = vunpack.c.l.b16 %v384
    %v1033 = vunpack.c.l.b16 %v385
    %v1034 = vunpack.c.h.b16 %v385
    %v1035 = vunpack.c.l.b16 %v386
    %v1036 = vunpack.c.h.b16 %v386
    %v1037 = vunpack.c.l.b16 %v387
    %v1038 = vunpack.c.l.b16 %v388
    %v1039 = vunpack.c.h.b16 %v388
    %v1040 = vunpack.c.l.b16 %v389
    %v1041 = vunpack.c.h.b16 %v389
    %v1042 = vunpack.c.l.b16 %v390
    %v1043 = vunpack.c.l.b16 %v391
    %v1044 = vunpack.c.h.b16 %v391
    %v1045 = vunpack.c.l.b16 %v392
    %v1046 = vunpack.c.h.b16 %v392
    %v1047 = vunpack.c.l.b16 %v393
    %v1048 = vunpack.c.l.b16 %v394
    %v1049 = vunpack.c.h.b16 %v394
    %v1050 = vunpack.c.l.b16 %v395
    %v1051 = vunpack.c.h.b16 %v395
    %v1052 = vunpack.c.l.b16 %v396
    %v1053 = vunpack.c.l.b16 %v397
    %v1054 = vunpack.c.h.b16 %v397
    %v1055 = vunpack.c.l.b16 %v398
    %v1056 = vunpack.c.h.b16 %v398
    %v1057 = vunpack.c.l.b16 %v399
    %v1058 = vunpack.c.l.b16 %v400
    %v1059 = vunpack.c.h.b16 %v400
    %v1060 = vunpack.c.l.b16 %v401
    %v1061 = vunpack.c.h.b16 %v401
    %v1062 = vunpack.c.l.b16 %v402
    %v1063 = vunpack.c.l.b16 %v403
    %v1064 = vunpack.c.h.b16 %v403
    %v1065 = vunpack.c.l.b16 %v404
    %v1066 = vunpack.c.h.b16 %v404
    %v1067 = vunpack.c.l.b16 %v405
    %v1068 = vunpack.c.l.b16 %v406
    %v1069 = vunpack.c.h.b16 %v406
    %v1070 = vunpack.c.l.b16 %v407
    %v1071 = vunpack.c.h.b16 %v407
    %v1072 = vunpack.c.l.b16 %v408
    %v1073 = vunpack.c.l.b16 %v409
    %v1074 = vunpack.c.h.b16 %v409
    %v1075 = vunpack.c.l.b16 %v410
    %v1076 = vunpack.c.h.b16 %v410
    %v1077 = vunpack.c.l.b16 %v411
    %v1078 = vunpack.c.l.b16 %v412
    %v1079 = vunpack.c.h.b16 %v412
    %v1080 = vunpack.c.l.b16 %v413
    %v1081 = vunpack.c.h.b16 %v413
    %v1082 = vunpack.c.l.b16 %v414
    %v1083 = vunpack.c.l.b16 %v415
    %v1084 = vunpack.c.h.b16 %v415
    %v1085 = vunpack.c.l.b16 %v416
    %v1086 = vunpack.c.h.b16 %v416
    %v1087 = vunpack.c.l.b16 %v417
    %v1088 = vunpack.c.l.b16 %v418
    %v1089 = vunpack.c.h.b16 %v418
    %v1090 = vunpack.c.l.b16 %v419
    %v1091 = vunpack.c.h.b16 %v419
    %v1092 = vunpack.c.l.b16 %v420
    %v1093 = vunpack.c.l.b16 %v421
    %v1094 = vunpack.c.h.b16 %v421
    %v1095 = vunpack.c.l.b16 %v422
    %v1096 = vunpack.c.h.b16 %v422
    %v1097 = vunpack.c.l.b16 %v423
    %v1098 = vunpack.c.l.b16 %v424
    %v1099 = vunpack.c.h.b16 %v424
    %v1100 = vunpack.c.l.b16 %v425
    %v1101 = vunpack.c.h.b16 %v425
    %v1102 = vunpack.c.l.b16 %v426
    %v1103 = vunpack.c.l.b16 %v427
    %v1104 = vunpack.c.h.b16 %v427
    %v1105 = vunpack.c.l.b16 %v428
    %v1106 = vunpack.c.h.b16 %v428
    %v1107 = vunpack.c.l.b16 %v429
    %v1108 = vunpack.c.l.b16 %v430
    %v1109 = vunpack.c.h.b16 %v430
    %v1110 = vunpack.c.l.b16 %v431
    %v1111 = vunpack.c.h.b16 %v431
    %v1112 = vunpack.c.l.b16 %v432
    %v1113 = vunpack.c.l.b16 %v433
    %v1114 = vunpack.c.h.b16 %v433
    %v1115 = vunpack.c.l.b16 %v434
    %v1116 = vunpack.c.h.b16 %v434
    %v1117 = vunpack.c.l.b16 %v435
    %v1118 = vunpack.c.l.b16 %v436
    %v1119 = vunpack.c.h.b16 %v436
    %v1120 = vunpack.c.l.b16 %v437
    %v1121 = vunpack.c.h.b16 %v437
    %v1122 = vunpack.c.l.b16 %v438
    %v1123 = vunpack.c.l.b16 %v439
    %v1124 = vunpack.c.h.b16 %v439
    %v1125 = vunpack.c.l.b16 %v440
    %v1126 = vunpack.c.h.b16 %v440
    %v1127 = vunpack.c.l.b16 %v441
    %v1128 = vunpack.c.l.b16 %v442
    %v1129 = vunpack.c.h.b16 %v442
    %v1130 = vunpack.c.l.b16 %v443
    %v1131 = vunpack.c.h.b16 %v443
    %v1132 = vunpack.c.l.b16 %v444
    %v1133 = vunpack.c.l.b16 %v445
    %v1134 = vunpack.c.h.b16 %v445
    %v1135 = vunpack.c.l.b16 %v446
    %v1136 = vunpack.c.h.b16 %v446
    %v1137 = vunpack.c.l.b16 %v447
    %v1138 = vunpack.c.l.b16 %v448
    %v1139 = vunpack.c.h.b16 %v448
    %v1140 = vunpack.c.l.b16 %v449
    %v1141 = vunpack.c.h.b16 %v449
    %v1142 = vunpack.c.l.b16 %v450
    %v1143 = vunpack.c.l.b16 %v451
    %v1144 = vunpack.c.h.b16 %v451
    %v1145 = vunpack.c.l.b16 %v452
    %v1146 = vunpack.c.h.b16 %v452
    %v1147 = vunpack.c.l.b16 %v453
    %v1148 = vunpack.c.l.b16 %v454
    %v1149 = vunpack.c.h.b16 %v454
    %v1150 = vunpack.c.l.b16 %v455
    %v1151 = vunpack.c.h.b16 %v455
    %v1152 = vunpack.c.l.b16 %v456
    %v1153 = vunpack.c.l.b16 %v457
    %v1154 = vunpack.c.h.b16 %v457
    %v1155 = vunpack.c.l.b16 %v458
    %v1156 = vunpack.c.h.b16 %v458
    %v1157 = vunpack.c.l.b16 %v459
    %v1158 = vunpack.c.l.b16 %v460
    %v1159 = vunpack.c.h.b16 %v460
    %v1160 = vunpack.c.l.b16 %v461
    %v1161 = vunpack.c.h.b16 %v461
    %v1162 = vunpack.c.l.b16 %v462
    %v1163 = vunpack.c.l.b16 %v463
    %v1164 = vunpack.c.h.b16 %v463
    %v1165 = vunpack.c.l.b16 %v464
    %v1166 = vunpack.c.h.b16 %v464
    %v1167 = vunpack.c.l.b16 %v465
    %v1168 = vunpack.c.l.b16 %v466
    %v1169 = vunpack.c.h.b16 %v466
    %v1170 = vunpack.c.l.b16 %v467
    %v1171 = vunpack.c.h.b16 %v467
    %v1172 = vunpack.c.l.b16 %v468
    %v1173 = vunpack.c.l.b16 %v469
    %v1174 = vunpack.c.h.b16 %v469
    %v1175 = vunpack.c.l.b16 %v470
    %v1176 = vunpack.c.h.b16 %v470
    %v1177 = vunpack.c.l.b16 %v471
    %v1178 = vunpack.c.l.b16 %v472
    %v1179 = vunpack.c.h.b16 %v472
    %v1180 = vunpack.c.l.b16 %v473
    %v1181 = vunpack.c.h.b16 %v473
    %v1182 = vunpack.c.l.b16 %v474
    %v1183 = vunpack.c.l.b16 %v475
    %v1184 = vunpack.c.h.b16 %v475
    %v1185 = vunpack.c.l.b16 %v476
    %v1186 = vunpack.c.h.b16 %v476
    %v1187 = vunpack.c.l.b16 %v477
    %v1188 = vunpack.c.l.b16 %v478
    %v1189 = vunpack.c.h.b16 %v478
    %v1190 = vunpack.c.l.b16 %v479
    %v1191 = vunpack.c.h.b16 %v479
    %v1192 = vunpack.c.l.b16 %v480
    %v1193 = vunpack.c.l.b16 %v481
    %v1194 = vunpack.c.h.b16 %v481
    %v1195 = vunpack.c.l.b16 %v482
    %v1196 = vunpack.c.h.b16 %v482
    %v1197 = vunpack.c.l.b16 %v483
    %v1198 = vunpack.c.l.b16 %v484
    %v1199 = vunpack.c.h.b16 %v484
    %v1200 = vunpack.c.l.b16 %v485
    %v1201 = vunpack.c.h.b16 %v485
    %v1202 = vunpack.c.l.b16 %v486
    %v1203 = vunpack.c.l.b16 %v487
    %v1204 = vunpack.c.h.b16 %v487
    %v1205 = vunpack.c.l.b16 %v488
    %v1206 = vunpack.c.h.b16 %v488
    %v1207 = vunpack.c.l.b16 %v489
    %v1208 = vunpack.c.l.b16 %v490
    %v1209 = vunpack.c.h.b16 %v490
    %v1210 = vunpack.c.l.b16 %v491
    %v1211 = vunpack.c.h.b16 %v491
    %v1212 = vunpack.c.l.b16 %v492
    %v1213 = vunpack.c.l.b16 %v493
    %v1214 = vunpack.c.h.b16 %v493
    %v1215 = vunpack.c.l.b16 %v494
    %v1216 = vunpack.c.h.b16 %v494
    %v1217 = vunpack.c.l.b16 %v495
    %v1218 = vunpack.c.l.b16 %v496
    %v1219 = vunpack.c.h.b16 %v496
    %v1220 = vunpack.c.l.b16 %v497
    %v1221 = vunpack.c.h.b16 %v497
    %v1222 = vunpack.c.l.b16 %v498
    %v1223 = vunpack.c.l.b16 %v499
    %v1224 = vunpack.c.h.b16 %v499
    %v1225 = vunpack.c.l.b16 %v500
    %v1226 = vunpack.c.h.b16 %v500
    %v1227 = vunpack.c.l.b16 %v501
    %v1228 = vunpack.c.l.b16 %v502
    %v1229 = vunpack.c.h.b16 %v502
    %v1230 = vunpack.c.l.b16 %v503
    %v1231 = vunpack.c.h.b16 %v503
    %v1232 = vunpack.c.l.b16 %v504
    %v1233 = vunpack.c.l.b16 %v505
    %v1234 = vunpack.c.h.b16 %v505
    %v1235 = vunpack.c.l.b16 %v506
    %v1236 = vunpack.c.h.b16 %v506
    %v1237 = vunpack.c.l.b16 %v507
    %v1238 = vunpack.c.l.b16 %v508
    %v1239 = vunpack.c.h.b16 %v508
    %v1240 = vunpack.c.l.b16 %v509
    %v1241 = vunpack.c.h.b16 %v509
    %v1242 = vunpack.c.l.b16 %v510
    %v1243 = vunpack.c.l.b16 %v511
    %v1244 = vunpack.c.h.b16 %v511
    %v1245 = vunpack.c.l.b16 %v512
    %v1246 = vunpack.c.h.b16 %v512
    %v1247 = vunpack.c.l.b16 %v513
    %v1248 = vunpack.c.l.b16 %v514
    %v1249 = vunpack.c.h.b16 %v514
    %v1250 = vunpack.c.l.b16 %v515
    %v1251 = vunpack.c.h.b16 %v515
    %v1252 = vunpack.c.l.b16 %v516
    %v1253 = vunpack.c.l.b16 %v517
    %v1254 = vunpack.c.h.b16 %v517
    %v1255 = vunpack.c.l.b16 %v518
    %v1256 = vunpack.c.h.b16 %v518
    %v1257 = vunpack.c.l.b16 %v519
    %v1258 = vunpack.c.l.b16 %v520
    %v1259 = vunpack.c.h.b16 %v520
    %v1260 = vunpack.c.l.b16 %v521
    %v1261 = vunpack.c.h.b16 %v521
    %v1262 = vunpack.c.l.b16 %v522
    %v1263 = vunpack.c.l.b16 %v523
    %v1264 = vunpack.c.h.b16 %v523
    %v1265 = vunpack.c.l.b16 %v524
    %v1266 = vunpack.c.h.b16 %v524
    %v1267 = vunpack.c.l.b16 %v525
    %v1268 = vunpack.c.l.b16 %v526
    %v1269 = vunpack.c.h.b16 %v526
    %v1270 = vunpack.c.l.b16 %v527
    %v1271 = vunpack.c.h.b16 %v527
    %v1272 = vunpack.c.l.b16 %v528
    %v1273 = vunpack.c.l.b16 %v529
    %v1274 = vunpack.c.h.b16 %v529
    %v1275 = vunpack.c.l.b16 %v530
    %v1276 = vunpack.c.h.b16 %v530
    %v1277 = vunpack.c.l.b16 %v531
    %v1278 = vunpack.c.l.b16 %v532
    %v1279 = vunpack.c.h.b16 %v532
    %v1280 = vunpack.c.l.b16 %v533
    %v1281 = vunpack.c.h.b16 %v533
    %v1282 = vunpack.c.l.b16 %v534
    %v1283 = vunpack.c.l.b16 %v535
    %v1284 = vunpack.c.h.b16 %v535
    %v1285 = vunpack.c.l.b16 %v536
    %v1286 = vunpack.c.h.b16 %v536
    %v1287 = vunpack.c.l.b16 %v537
    %v1288 = vunpack.c.l.b16 %v538
    %v1289 = vunpack.c.h.b16 %v538
    %v1290 = vunpack.c.l.b16 %v539
    %v1291 = vunpack.c.h.b16 %v539
    %v1292 = vunpack.c.l.b16 %v540
    %v1293 = vunpack.c.l.b16 %v541
    %v1294 = vunpack.c.h.b16 %v541
    %v1295 = vunpack.c.l.b16 %v542
    %v1296 = vunpack.c.h.b16 %v542
    %v1297 = vunpack.c.l.b16 %v543
    %v1298 = vunpack.c.l.b16 %v544
    %v1299 = vunpack.c.h.b16 %v544
    %v1300 = vunpack.c.l.b16 %v545
    %v1301 = vunpack.c.h.b16 %v545
    %v1302 = vunpack.c.l.b16 %v546
    %v1303 = vunpack.c.l.b16 %v547
    %v1304 = vunpack.c.h.b16 %v547
    %v1305 = vunpack.c.l.b16 %v548
    %v1306 = vunpack.c.h.b16 %v548
    %v1307 = vunpack.c.l.b16 %v549
    %v1308 = vunpack.c.l.b16 %v550
    %v1309 = vunpack.c.h.b16 %v550
    %v1310 = vunpack.c.l.b16 %v551
    %v1311 = vunpack.c.h.b16 %v551
    %v1312 = vunpack.c.l.b16 %v552
    %v1313 = vunpack.c.l.b16 %v553
    %v1314 = vunpack.c.h.b16 %v553
    %v1315 = vunpack.c.l.b16 %v554
    %v1316 = vunpack.c.h.b16 %v554
    %v1317 = vunpack.c.l.b16 %v555
    %v1318 = vunpack.c.l.b16 %v556
    %v1319 = vunpack.c.h.b16 %v556
    %v1320 = vunpack.c.l.b16 %v557
    %v1321 = vunpack.c.h.b16 %v557
    %v1322 = vunpack.c.l.b16 %v558
    %v1323 = vunpack.c.l.b16 %v559
    %v1324 = vunpack.c.h.b16 %v559
    %v1325 = vunpack.c.l.b16 %v560
    %v1326 = vunpack.c.h.b16 %v560
    %v1327 = vunpack.c.l.b16 %v561
    %v1328 = vunpack.c.l.b16 %v562
    %v1329 = vunpack.c.h.b16 %v562
    %v1330 = vunpack.c.l.b16 %v563
    %v1331 = vunpack.c.h.b16 %v563
    %v1332 = vunpack.c.l.b16 %v564
    %v1333 = vunpack.c.l.b16 %v565
    %v1334 = vunpack.c.h.b16 %v565
    %v1335 = vunpack.c.l.b16 %v566
    %v1336 = vunpack.c.h.b16 %v566
    %v1337 = vunpack.c.l.b16 %v567
    %v1338 = vunpack.c.l.b16 %v568
    %v1339 = vunpack.c.h.b16 %v568
    %v1340 = vunpack.c.l.b16 %v569
    %v1341 = vunpack.c.h.b16 %v569
    %v1342 = vunpack.c.l.b16 %v570
    %v1343 = vunpack.c.l.b16 %v571
    %v1344 = vunpack.c.h.b16 %v571
    %v1345 = vunpack.c.l.b16 %v572
    %v1346 = vunpack.c.h.b16 %v572
    %v1347 = vunpack.c.l.b16 %v573
    %v1348 = vunpack.c.l.b16 %v574
    %v1349 = vunpack.c.h.b16 %v574
    %v1350 = vunpack.c.l.b16 %v575
    %v1351 = vunpack.c.h.b16 %v575
    %v1352 = vunpack.c.l.b16 %v576
    %v1353 = vunpack.c.l.b16 %v577
    %v1354 = vunpack.c.h.b16 %v577
    %v1355 = vunpack.c.l.b16 %v578
    %v1356 = vunpack.c.h.b16 %v578
    %v1357 = vunpack.c.l.b16 %v579
    %v1358 = vunpack.c.l.b16 %v580
    %v1359 = vunpack.c.h.b16 %v580
    %v1360 = vunpack.c.l.b16 %v581
    %v1361 = vunpack.c.h.b16 %v581
    %v1362 = vunpack.c.l.b16 %v582
    %v1363 = vunpack.c.l.b16 %v583
    %v1364 = vunpack.c.h.b16 %v583
    %v1365 = vunpack.c.l.b16 %v584
    %v1366 = vunpack.c.h.b16 %v584
    %v1367 = vunpack.c.l.b16 %v585
    %v1368 = vunpack.c.l.b16 %v586
    %v1369 = vunpack.c.h.b16 %v586
    %v1370 = vunpack.c.l.b16 %v587
    %v1371 = vunpack.c.h.b16 %v587
    %v1372 = vunpack.c.l.b16 %v588
    %v1373 = vunpack.c.l.b16 %v589
    %v1374 = vunpack.c.h.b16 %v589
    %v1375 = vunpack.c.l.b16 %v590
    %v1376 = vunpack.c.h.b16 %v590
    %v1377 = vunpack.c.l.b16 %v591
    %v1378 = vunpack.c.l.b16 %v592
    %v1379 = vunpack.c.h.b16 %v592
    %v1380 = vunpack.c.l.b16 %v593
    %v1381 = vunpack.c.h.b16 %v593
    %v1382 = vunpack.c.l.b16 %v594
    %v1383 = vunpack.c.l.b16 %v595
    %v1384 = vunpack.c.h.b16 %v595
    %v1385 = vunpack.c.l.b16 %v596
    %v1386 = vunpack.c.h.b16 %v596
    %v1387 = vunpack.c.l.b16 %v597
    %v1388 = vunpack.c.l.b16 %v598
    %v1389 = vunpack.c.h.b16 %v598
    %v1390 = vunpack.c.l.b16 %v599
    %v1391 = vunpack.c.h.b16 %v599
    %v1392 = vunpack.c.l.b16 %v600
    %v1393 = vunpack.c.l.b16 %v601
    %v1394 = vunpack.c.h.b16 %v601
    %v1395 = vunpack.c.l.b16 %v602
    %v1396 = vunpack.c.h.b16 %v602
    %v1397 = vunpack.c.l.b16 %v603
    %v1398 = vunpack.c.l.b16 %v604
    %v1399 = vunpack.c.h.b16 %v604
    %v1400 = vunpack.c.l.b16 %v605
    %v1401 = vunpack.c.h.b16 %v605
    %v1402 = vunpack.c.l.b16 %v606
    %v1403 = vunpack.c.l.b16 %v607
    %v1404 = vunpack.c.h.b16 %v607
    %v1405 = vunpack.c.l.b16 %v608
    %v1406 = vunpack.c.h.b16 %v608
    %v1407 = vunpack.c.l.b16 %v609
    %v1408 = vunpack.c.l.b16 %v610
    %v1409 = vunpack.c.h.b16 %v610
    %v1410 = vunpack.c.l.b16 %v611
    %v1411 = vunpack.c.h.b16 %v611
    %v1412 = vunpack.c.l.b16 %v612
    %v1413 = vunpack.c.l.b16 %v613
    %v1414 = vunpack.c.h.b16 %v613
    %v1415 = vunpack.c.l.b16 %v614
    %v1416 = vunpack.c.h.b16 %v614
    %v1417 = vunpack.c.l.b16 %v615
    %v1418 = vunpack.c.l.b16 %v616
    %v1419 = vunpack.c.h.b16 %v616
    %v1420 = vunpack.c.l.b16 %v617
    %v1421 = vunpack.c.h.b16 %v617
    %v1422 = vunpack.c.l.b16 %v618
    %v1423 = vunpack.c.l.b16 %v619
    %v1424 = vunpack.c.h.b16 %v619
    %v1425 = vunpack.c.l.b16 %v620
    %v1426 = vunpack.c.h.b16 %v620
    %v1427 = vunpack.c.l.b16 %v621
    %v1428 = vunpack.c.l.b16 %v622
    %v1429 = vunpack.c.h.b16 %v622
    %v1430 = vunpack.c.l.b16 %v623
    %v1431 = vunpack.c.h.b16 %v623
    %v1432 = vunpack.c.l.b16 %v624
    %v1433 = vunpack.c.l.b16 %v625
    %v1434 = vunpack.c.h.b16 %v625
    %v1435 = vunpack.c.l.b16 %v626
    %v1436 = vunpack.c.h.b16 %v626
    %v1437 = vunpack.c.l.b16 %v627
    %v1438 = vunpack.c.l.b16 %v628
    %v1439 = vunpack.c.h.b16 %v628
    %v1440 = vunpack.c.l.b16 %v629
    %v1441 = vunpack.c.h.b16 %v629
    %v1442 = vunpack.c.l.b16 %v630
    %v1443 = vpack.c.b16 %v948, %v943
    %v1444 = vpack.c.b16 %v949, %v944
    %v1445 = vpack.c.b16 %v950, %v945
    %v1446 = vpack.c.b16 %v951, %v946
    %v1447 = vpack.c.b16 %v952, %v947
    %v1448 = vpack.c.b16 %v958, %v953
    %v1449 = vpack.c.b16 %v959, %v954
    %v1450 = vpack.c.b16 %v960, %v955
    %v1451 = vpack.c.b16 %v961, %v956
    %v1452 = vpack.c.b16 %v962, %v957
    %v1453 = vpack.c.b16 %v968, %v963
    %v1454 = vpack.c.b16 %v969, %v964
    %v1455 = vpack.c.b16 %v970, %v965
    %v1456 = vpack.c.b16 %v971, %v966
    %v1457 = vpack.c.b16 %v972, %v967
    %v1458 = vpack.c.b16 %v978, %v973
    %v1459 = vpack.c.b16 %v979, %v974
    %v1460 = vpack.c.b16 %v980, %v975
    %v1461 = vpack.c.b16 %v981, %v976
    %v1462 = vpack.c.b16 %v982, %v977
    %v1463 = vpack.c.b16 %v988, %v983
    %v1464 = vpack.c.b16 %v989, %v984
    %v1465 = vpack.c.b16 %v990, %v985
    %v1466 = vpack.c.b16 %v991, %v986
    %v1467 = vpack.c.b16 %v992, %v987
    %v1468 = vpack.c.b16 %v998, %v993
    %v1469 = vpack.c.b16 %v999, %v994
    %v1470 = vpack.c.b16 %v1000, %v995
    %v1471 = vpack.c.b16 %v1001, %v996
    %v1472 = vpack.c.b16 %v1002, %v997
    %v1473 = vpack.c.b16 %v1008, %v1003
    %v1474 = vpack.c.b16 %v1009, %v1004
    %v1475 = vpack.c.b16 %v1010, %v1005
    %v1476 = vpack.c.b16 %v1011, %v1006
    %v1477 = vpack.c.b16 %v1012, %v1007
    %v1478 = vpack.c.b16 %v1018, %v1013
    %v1479 = vpack.c.b16 %v1019, %v1014
    %v1480 = vpack.c.b16 %v1020, %v1015
    %v1481 = vpack.c.b16 %v1021, %v1016
    %v1482 = vpack.c.b16 %v1022, %v1017
    %v1483 = vpack.c.b16 %v1028, %v1023
    %v1484 = vpack.c.b16 %v1029, %v1024
    %v1485 = vpack.c.b16 %v1030, %v1025
    %v1486 = vpack.c.b16 %v1031, %v1026
    %v1487 = vpack.c.b16 %v1032, %v1027
    %v1488 = vpack.c.b16 %v1038, %v1033
    %v1489 = vpack.c.b16 %v1039, %v1034
    %v1490 = vpack.c.b16 %v1040, %v1035
    %v1491 = vpack.c.b16 %v1041, %v1036
    %v1492 = vpack.c.b16 %v1042, %v1037
    %v1493 = vpack.c.b16 %v1048, %v1043
    %v1494 = vpack.c.b16 %v1049, %v1044
    %v1495 = vpack.c.b16 %v1050, %v1045
    %v1496 = vpack.c.b16 %v1051, %v1046
    %v1497 = vpack.c.b16 %v1052, %v1047
    %v1498 = vpack.c.b16 %v1058, %v1053
    %v1499 = vpack.c.b16 %v1059, %v1054
    %v1500 = vpack.c.b16 %v1060, %v1055
    %v1501 = vpack.c.b16 %v1061, %v1056
    %v1502 = vpack.c.b16 %v1062, %v1057
    %v1503 = vpack.c.b16 %v1068, %v1063
    %v1504 = vpack.c.b16 %v1069, %v1064
    %v1505 = vpack.c.b16 %v1070, %v1065
    %v1506 = vpack.c.b16 %v1071, %v1066
    %v1507 = vpack.c.b16 %v1072, %v1067
    %v1508 = vpack.c.b16 %v1078, %v1073
    %v1509 = vpack.c.b16 %v1079, %v1074
    %v1510 = vpack.c.b16 %v1080, %v1075
    %v1511 = vpack.c.b16 %v1081, %v1076
    %v1512 = vpack.c.b16 %v1082, %v1077
    %v1513 = vpack.c.b16 %v1088, %v1083
    %v1514 = vpack.c.b16 %v1089, %v1084
    %v1515 = vpack.c.b16 %v1090, %v1085
    %v1516 = vpack.c.b16 %v1091, %v1086
    %v1517 = vpack.c.b16 %v1092, %v1087
    %v1518 = vpack.c.b16 %v1098, %v1093
    %v1519 = vpack.c.b16 %v1099, %v1094
    %v1520 = vpack.c.b16 %v1100, %v1095
    %v1521 = vpack.c.b16 %v1101, %v1096
    %v1522 = vpack.c.b16 %v1102, %v1097
    %v1523 = vpack.c.b16 %v1108, %v1103
    %v1524 = vpack.c.b16 %v1109, %v1104
    %v1525 = vpack.c.b16 %v1110, %v1105
    %v1526 = vpack.c.b16 %v1111, %v1106
    %v1527 = vpack.c.b16 %v1112, %v1107
    %v1528 = vpack.c.b16 %v1118, %v1113
    %v1529 = vpack.c.b16 %v1119, %v1114
    %v1530 = vpack.c.b16 %v1120, %v1115
    %v1531 = vpack.c.b16 %v1121, %v1116
    %v1532 = vpack.c.b16 %v1122, %v1117
    %v1533 = vpack.c.b16 %v1128, %v1123
    %v1534 = vpack.c.b16 %v1129, %v1124
    %v1535 = vpack.c.b16 %v1130, %v1125
    %v1536 = vpack.c.b16 %v1131, %v1126
    %v1537 = vpack.c.b16 %v1132, %v1127
    %v1538 = vpack.c.b16 %v1138, %v1133
    %v1539 = vpack.c.b16 %v1139, %v1134
    %v1540 = vpack.c.b16 %v1140, %v1135
    %v1541 = vpack.c.b16 %v1141, %v1136
    %v1542 = vpack.c.b16 %v1142, %v1137
    %v1543 = vpack.c.b16 %v1148, %v1143
    %v1544 = vpack.c.b16 %v1149, %v1144
    %v1545 = vpack.c.b16 %v1150, %v1145
    %v1546 = vpack.c.b16 %v1151, %v1146
    %v1547 = vpack.c.b16 %v1152, %v1147
    %v1548 = vpack.c.b16 %v1158, %v1153
    %v1549 = vpack.c.b16 %v1159, %v1154
    %v1550 = vpack.c.b16 %v1160, %v1155
    %v1551 = vpack.c.b16 %v1161, %v1156
    %v1552 = vpack.c.b16 %v1162, %v1157
    %v1553 = vpack.c.b16 %v1168, %v1163
    %v1554 = vpack.c.b16 %v1169, %v1164
    %v1555 = vpack.c.b16 %v1170, %v1165
    %v1556 = vpack.c.b16 %v1171, %v1166
    %v1557 = vpack.c.b16 %v1172, %v1167
    %v1558 = vpack.c.b16 %v1178, %v1173
    %v1559 = vpack.c.b16 %v1179, %v1174
    %v1560 = vpack.c.b16 %v1180, %v1175
    %v1561 = vpack.c.b16 %v1181, %v1176
    %v1562 = vpack.c.b16 %v1182, %v1177
    %v1563 = vpack.c.b16 %v1188, %v1183
    %v1564 = vpack.c.b16 %v1189, %v1184
    %v1565 = vpack.c.b16 %v1190, %v1185
    %v1566 = vpack.c.b16 %v1191, %v1186
    %v1567 = vpack.c.b16 %v1192, %v1187
    %v1568 = vpack.c.b16 %v1198, %v1193
    %v1569 = vpack.c.b16 %v1199, %v1194
    %v1570 = vpack.c.b16 %v1200, %v1195
    %v1571 = vpack.c.b16 %v1201, %v1196
    %v1572 = vpack.c.b16 %v1202, %v1197
    %v1573 = vpack.c.b16 %v1208, %v1203
    %v1574 = vpack.c.b16 %v1209, %v1204
    %v1575 = vpack.c.b16 %v1210, %v1205
    %v1576 = vpack.c.b16 %v1211, %v1206
    %v1577 = vpack.c.b16 %v1212, %v1207
    %v1578 = vpack.c.b16 %v1218, %v1213
    %v1579 = vpack.c.b16 %v1219, %v1214
    %v1580 = vpack.c.b16 %v1220, %v1215
    %v1581 = vpack.c.b16 %v1221, %v1216
    %v1582 = vpack.c.b16 %v1222, %v1217
    %v1583 = vpack.c.b16 %v1228, %v1223
    %v1584 = vpack.c.b16 %v1229, %v1224
    %v1585 = vpack.c.b16 %v1230, %v1225
    %v1586 = vpack.c.b16 %v1231, %v1226
    %v1587 = vpack.c.b16 %v1232, %v1227
    %v1588 = vpack.c.b16 %v1238, %v1233
    %v1589 = vpack.c.b16 %v1239, %v1234
    %v1590 = vpack.c.b16 %v1240, %v1235
    %v1591 = vpack.c.b16 %v1241, %v1236
    %v1592 = vpack.c.b16 %v1242, %v1237
    %v1593 = vpack.c.b16 %v1248, %v1243
    %v1594 = vpack.c.b16 %v1249, %v1244
    %v1595 = vpack.c.b16 %v1250, %v1245
    %v1596 = vpack.c.b16 %v1251, %v1246
    %v1597 = vpack.c.b16 %v1252, %v1247
    %v1598 = vpack.c.b16 %v1258, %v1253
    %v1599 = vpack.c.b16 %v1259, %v1254
    %v1600 = vpack.c.b16 %v1260, %v1255
    %v1601 = vpack.c.b16 %v1261, %v1256
    %v1602 = vpack.c.b16 %v1262, %v1257
    %v1603 = vpack.c.b16 %v1268, %v1263
    %v1604 = vpack.c.b16 %v1269, %v1264
    %v1605 = vpack.c.b16 %v1270, %v1265
    %v1606 = vpack.c.b16 %v1271, %v1266
    %v1607 = vpack.c.b16 %v1272, %v1267
    %v1608 = vpack.c.b16 %v1278, %v1273
    %v1609 = vpack.c.b16 %v1279, %v1274
    %v1610 = vpack.c.b16 %v1280, %v1275
    %v1611 = vpack.c.b16 %v1281, %v1276
    %v1612 = vpack.c.b16 %v1282, %v1277
    %v1613 = vpack.c.b16 %v1288, %v1283
    %v1614 = vpack.c.b16 %v1289, %v1284
    %v1615 = vpack.c.b16 %v1290, %v1285
    %v1616 = vpack.c.b16 %v1291, %v1286
    %v1617 = vpack.c.b16 %v1292, %v1287
    %v1618 = vpack.c.b16 %v1298, %v1293
    %v1619 = vpack.c.b16 %v1299, %v1294
    %v1620 = vpack.c.b16 %v1300, %v1295
    %v1621 = vpack.c.b16 %v1301, %v1296
    %v1622 = vpack.c.b16 %v1302, %v1297
    %v1623 = vpack.c.b16 %v1308, %v1303
    %v1624 = vpack.c.b16 %v1309, %v1304
    %v1625 = vpack.c.b16 %v1310, %v1305
    %v1626 = vpack.c.b16 %v1311, %v1306
    %v1627 = vpack.c.b16 %v1312, %v1307
    %v1628 = vpack.c.b16 %v1318, %v1313
    %v1629 = vpack.c.b16 %v1319, %v1314
    %v1630 = vpack.c.b16 %v1320, %v1315
    %v1631 = vpack.c.b16 %v1321, %v1316
    %v1632 = vpack.c.b16 %v1322, %v1317
    %v1633 = vpack.c.b16 %v1328, %v1323
    %v1634 = vpack.c.b16 %v1329, %v1324
    %v1635 = vpack.c.b16 %v1330, %v1325
    %v1636 = vpack.c.b16 %v1331, %v1326
    %v1637 = vpack.c.b16 %v1332, %v1327
    %v1638 = vpack.c.b16 %v1338, %v1333
    %v1639 = vpack.c.b16 %v1339, %v1334
    %v1640 = vpack.c.b16 %v1340, %v1335
    %v1641 = vpack.c.b16 %v1341, %v1336
    %v1642 = vpack.c.b16 %v1342, %v1337
    %v1643 = vpack.c.b16 %v1348, %v1343
    %v1644 = vpack.c.b16 %v1349, %v1344
    %v1645 = vpack.c.b16 %v1350, %v1345
    %v1646 = vpack.c.b16 %v1351, %v1346
    %v1647 = vpack.c.b16 %v1352, %v1347
    %v1648 = vpack.c.b16 %v1358, %v1353
    %v1649 = vpack.c.b16 %v1359, %v1354
    %v1650 = vpack.c.b16 %v1360, %v1355
    %v1651 = vpack.c.b16 %v1361, %v1356
    %v1652 = vpack.c.b16 %v1362, %v1357
    %v1653 = vpack.c.b16 %v1368, %v1363
    %v1654 = vpack.c.b16 %v1369, %v1364
    %v1655 = vpack.c.b16 %v1370, %v1365
    %v1656 = vpack.c.b16 %v1371, %v1366
    %v1657 = vpack.c.b16 %v1372, %v1367
    %v1658 = vpack.c.b16 %v1378, %v1373
    %v1659 = vpack.c.b16 %v1379, %v1374
    %v1660 = vpack.c.b16 %v1380, %v1375
    %v1661 = vpack.c.b16 %v1381, %v1376
    %v1662 = vpack.c.b16 %v1382, %v1377
    %v1663 = vpack.c.b16 %v1388, %v1383
    %v1664 = vpack.c.b16 %v1389, %v1384
    %v1665 = vpack.c.b16 %v1390, %v1385
    %v1666 = vpack.c.b16 %v1391, %v1386
    %v1667 = vpack.c.b16 %v1392, %v1387
    %v1668 = vpack.c.b16 %v1398, %v1393
    %v1669 = vpack.c.b16 %v1399, %v1394
    %v1670 = vpack.c.b16 %v1400, %v1395
    %v1671 = vpack.c.b16 %v1401, %v1396
    %v1672 = vpack.c.b16 %v1402, %v1397
    %v1673 = vpack.c.b16 %v1408, %v1403
    %v1674 = vpack.c.b16 %v1409, %v1404
    %v1675 = vpack.c.b16 %v1410, %v1405
    %v1676 = vpack.c.b16 %v1411, %v1406
    %v1677 = vpack.c.b16 %v1412, %v1407
    %v1678 = vpack.c.b16 %v1418, %v1413
    %v1679 = vpack.c.b16 %v1419, %v1414
    %v1680 = vpack.c.b16 %v1420, %v1415
    %v1681 = vpack.c.b16 %v1421, %v1416
    %v1682 = vpack.c.b16 %v1422, %v1417
    %v1683 = vpack.c.b16 %v1428, %v1423
    %v1684 = vpack.c.b16 %v1429, %v1424
    %v1685 = vpack.c.b16 %v1430, %v1425
    %v1686 = vpack.c.b16 %v1431, %v1426
    %v1687 = vpack.c.b16 %v1432, %v1427
    %v1688 = vpack.c.b16 %v1438, %v1433
    %v1689 = vpack.c.b16 %v1439, %v1434
    %v1690 = vpack.c.b16 %v1440, %v1435
    %v1691 = vpack.c.b16 %v1441, %v1436
    %v1692 = vpack.c.b16 %v1442, %v1437
    %vm1943 = vcmask 261120
    %v1945 = vsel %vm1943, %v330, 0
    %1947 = vmatpush.bf16.msra.mxu0 %v1478
    %1948 = vmatpush.bf16.msra.mxu0 %v1473
    %1949 = vmatpush.bf16.msra.mxu0 %v1468
    %1950 = vmatpush.bf16.msra.mxu0 %v1463
    %1951 = vmatpush.bf16.msra.mxu0 %v1458
    %1952 = vmatpush.bf16.msra.mxu0 %v1453
    %1953 = vmatpush.bf16.msra.mxu0 %v1448
    %1954 = vmatpush.bf16.msra.mxu0 %v1443
    %1955 = vmatmul.bf16.gmra.mxu0 %v324
    %v1956 = vpop.f32.mrf.mxu0
    %v1957 = vadd.f32 %v633, %v1956
    %v1958 = vpop.f32.mrf.mxu0
    %1959 = vdwg.mxu0
    %1960 = vmatpush.bf16.msra.mxu0 %v1518
    %1961 = vmatpush.bf16.msra.mxu0 %v1513
    %1962 = vmatpush.bf16.msra.mxu0 %v1508
    %1963 = vmatpush.bf16.msra.mxu0 %v1503
    %1964 = vmatpush.bf16.msra.mxu0 %v1498
    %1965 = vmatpush.bf16.msra.mxu0 %v1493
    %1966 = vmatpush.bf16.msra.mxu0 %v1488
    %1967 = vmatpush.bf16.msra.mxu0 %v1483
    %1968 = vmatmul.bf16.gmra.mxu0 %v325
    %v1969 = vpop.f32.mrf.mxu0
    %v1970 = vadd.f32 %v1957, %v1969
    %v1971 = vpop.f32.mrf.mxu0
    %1972 = vdwg.mxu0
    %1973 = vmatpush.bf16.msra.mxu0 %v1558
    %1974 = vmatpush.bf16.msra.mxu0 %v1553
    %1975 = vmatpush.bf16.msra.mxu0 %v1548
    %1976 = vmatpush.bf16.msra.mxu0 %v1543
    %1977 = vmatpush.bf16.msra.mxu0 %v1538
    %1978 = vmatpush.bf16.msra.mxu0 %v1533
    %1979 = vmatpush.bf16.msra.mxu0 %v1528
    %1980 = vmatpush.bf16.msra.mxu0 %v1523
    %1981 = vmatmul.bf16.gmra.mxu0 %v326
    %v1982 = vpop.f32.mrf.mxu0
    %v1983 = vadd.f32 %v1970, %v1982
    %v1984 = vpop.f32.mrf.mxu0
    %1985 = vdwg.mxu0
    %1986 = vmatpush.bf16.msra.mxu0 %v1598
    %1987 = vmatpush.bf16.msra.mxu0 %v1593
    %1988 = vmatpush.bf16.msra.mxu0 %v1588
    %1989 = vmatpush.bf16.msra.mxu0 %v1583
    %1990 = vmatpush.bf16.msra.mxu0 %v1578
    %1991 = vmatpush.bf16.msra.mxu0 %v1573
    %1992 = vmatpush.bf16.msra.mxu0 %v1568
    %1993 = vmatpush.bf16.msra.mxu0 %v1563
    %1994 = vmatmul.bf16.gmra.mxu0 %v327
    %v1995 = vpop.f32.mrf.mxu0
    %v1996 = vadd.f32 %v1983, %v1995
    %v1997 = vpop.f32.mrf.mxu0
    %1998 = vdwg.mxu0
    %1999 = vmatpush.bf16.msra.mxu0 %v1638
    %2000 = vmatpush.bf16.msra.mxu0 %v1633
    %2001 = vmatpush.bf16.msra.mxu0 %v1628
    %2002 = vmatpush.bf16.msra.mxu0 %v1623
    %2003 = vmatpush.bf16.msra.mxu0 %v1618
    %2004 = vmatpush.bf16.msra.mxu0 %v1613
    %2005 = vmatpush.bf16.msra.mxu0 %v1608
    %2006 = vmatpush.bf16.msra.mxu0 %v1603
    %2007 = vmatmul.bf16.gmra.mxu0 %v328
    %v2008 = vpop.f32.mrf.mxu0
    %v2009 = vadd.f32 %v1996, %v2008
    %v2010 = vpop.f32.mrf.mxu0
    %2011 = vdwg.mxu0
    %2012 = vmatpush.bf16.msra.mxu0 %v1678
    %2013 = vmatpush.bf16.msra.mxu0 %v1673
    %2014 = vmatpush.bf16.msra.mxu0 %v1668
    %2015 = vmatpush.bf16.msra.mxu0 %v1663
    %2016 = vmatpush.bf16.msra.mxu0 %v1658
    %2017 = vmatpush.bf16.msra.mxu0 %v1653
    %2018 = vmatpush.bf16.msra.mxu0 %v1648
    %2019 = vmatpush.bf16.msra.mxu0 %v1643
    %2020 = vmatmul.bf16.gmra.mxu0 %v329
    %v2021 = vpop.f32.mrf.mxu0
    %v2022 = vadd.f32 %v2009, %v2021
    %v2023 = vpop.f32.mrf.mxu0
    %2024 = vdwg.mxu0
    %2025 = vmatpush.bf16.msra.mxu0 0
    %2026 = vmatpush.bf16.msra.mxu0 0
    %2027 = vmatpush.bf16.msra.mxu0 0
    %2028 = vmatpush.bf16.msra.mxu0 0
    %2029 = vmatpush.bf16.msra.mxu0 0
    %2030 = vmatpush.bf16.msra.mxu0 0
    %2031 = vmatpush.bf16.msra.mxu0 %v1688
    %2032 = vmatpush.bf16.msra.mxu0 %v1683
    %2033 = vmatmul.bf16.gmra.mxu0 %v1945
    %v2034 = vpop.f32.mrf.mxu0
    %v2035 = vadd.f32 %v2022, %v2034
    %v2036 = vpop.f32.mrf.mxu0
    %2037 = vdwg.mxu0
    %2038 = vmatpush.bf16.msra.mxu0 %v1479
    %2039 = vmatpush.bf16.msra.mxu0 %v1474
    %2040 = vmatpush.bf16.msra.mxu0 %v1469
    %2041 = vmatpush.bf16.msra.mxu0 %v1464
    %2042 = vmatpush.bf16.msra.mxu0 %v1459
    %2043 = vmatpush.bf16.msra.mxu0 %v1454
    %2044 = vmatpush.bf16.msra.mxu0 %v1449
    %2045 = vmatpush.bf16.msra.mxu0 %v1444
    %2046 = vmatmul.bf16.gmra.mxu0 %v324
    %v2047 = vpop.f32.mrf.mxu0
    %v2048 = vadd.f32 %v634, %v2047
    %v2049 = vpop.f32.mrf.mxu0
    %2050 = vdwg.mxu0
    %2051 = vmatpush.bf16.msra.mxu0 %v1519
    %2052 = vmatpush.bf16.msra.mxu0 %v1514
    %2053 = vmatpush.bf16.msra.mxu0 %v1509
    %2054 = vmatpush.bf16.msra.mxu0 %v1504
    %2055 = vmatpush.bf16.msra.mxu0 %v1499
    %2056 = vmatpush.bf16.msra.mxu0 %v1494
    %2057 = vmatpush.bf16.msra.mxu0 %v1489
    %2058 = vmatpush.bf16.msra.mxu0 %v1484
    %2059 = vmatmul.bf16.gmra.mxu0 %v325
    %v2060 = vpop.f32.mrf.mxu0
    %v2061 = vadd.f32 %v2048, %v2060
    %v2062 = vpop.f32.mrf.mxu0
    %2063 = vdwg.mxu0
    %2064 = vmatpush.bf16.msra.mxu0 %v1559
    %2065 = vmatpush.bf16.msra.mxu0 %v1554
    %2066 = vmatpush.bf16.msra.mxu0 %v1549
    %2067 = vmatpush.bf16.msra.mxu0 %v1544
    %2068 = vmatpush.bf16.msra.mxu0 %v1539
    %2069 = vmatpush.bf16.msra.mxu0 %v1534
    %2070 = vmatpush.bf16.msra.mxu0 %v1529
    %2071 = vmatpush.bf16.msra.mxu0 %v1524
    %2072 = vmatmul.bf16.gmra.mxu0 %v326
    %v2073 = vpop.f32.mrf.mxu0
    %v2074 = vadd.f32 %v2061, %v2073
    %v2075 = vpop.f32.mrf.mxu0
    %2076 = vdwg.mxu0
    %2077 = vmatpush.bf16.msra.mxu0 %v1599
    %2078 = vmatpush.bf16.msra.mxu0 %v1594
    %2079 = vmatpush.bf16.msra.mxu0 %v1589
    %2080 = vmatpush.bf16.msra.mxu0 %v1584
    %2081 = vmatpush.bf16.msra.mxu0 %v1579
    %2082 = vmatpush.bf16.msra.mxu0 %v1574
    %2083 = vmatpush.bf16.msra.mxu0 %v1569
    %2084 = vmatpush.bf16.msra.mxu0 %v1564
    %2085 = vmatmul.bf16.gmra.mxu0 %v327
    %v2086 = vpop.f32.mrf.mxu0
    %v2087 = vadd.f32 %v2074, %v2086
    %v2088 = vpop.f32.mrf.mxu0
    %2089 = vdwg.mxu0
    %2090 = vmatpush.bf16.msra.mxu0 %v1639
    %2091 = vmatpush.bf16.msra.mxu0 %v1634
    %2092 = vmatpush.bf16.msra.mxu0 %v1629
    %2093 = vmatpush.bf16.msra.mxu0 %v1624
    %2094 = vmatpush.bf16.msra.mxu0 %v1619
    %2095 = vmatpush.bf16.msra.mxu0 %v1614
    %2096 = vmatpush.bf16.msra.mxu0 %v1609
    %2097 = vmatpush.bf16.msra.mxu0 %v1604
    %2098 = vmatmul.bf16.gmra.mxu0 %v328
    %v2099 = vpop.f32.mrf.mxu0
    %v2100 = vadd.f32 %v2087, %v2099
    %v2101 = vpop.f32.mrf.mxu0
    %2102 = vdwg.mxu0
    %2103 = vmatpush.bf16.msra.mxu0 %v1679
    %2104 = vmatpush.bf16.msra.mxu0 %v1674
    %2105 = vmatpush.bf16.msra.mxu0 %v1669
    %2106 = vmatpush.bf16.msra.mxu0 %v1664
    %2107 = vmatpush.bf16.msra.mxu0 %v1659
    %2108 = vmatpush.bf16.msra.mxu0 %v1654
    %2109 = vmatpush.bf16.msra.mxu0 %v1649
    %2110 = vmatpush.bf16.msra.mxu0 %v1644
    %2111 = vmatmul.bf16.gmra.mxu0 %v329
    %v2112 = vpop.f32.mrf.mxu0
    %v2113 = vadd.f32 %v2100, %v2112
    %v2114 = vpop.f32.mrf.mxu0
    %2115 = vdwg.mxu0
    %2116 = vmatpush.bf16.msra.mxu0 0
    %2117 = vmatpush.bf16.msra.mxu0 0
    %2118 = vmatpush.bf16.msra.mxu0 0
    %2119 = vmatpush.bf16.msra.mxu0 0
    %2120 = vmatpush.bf16.msra.mxu0 0
    %2121 = vmatpush.bf16.msra.mxu0 0
    %2122 = vmatpush.bf16.msra.mxu0 %v1689
    %2123 = vmatpush.bf16.msra.mxu0 %v1684
    %2124 = vmatmul.bf16.gmra.mxu0 %v1945
    %v2125 = vpop.f32.mrf.mxu0
    %v2126 = vadd.f32 %v2113, %v2125
    %v2127 = vpop.f32.mrf.mxu0
    %2128 = vdwg.mxu0
    %2129 = vmatpush.bf16.msra.mxu0 %v1480
    %2130 = vmatpush.bf16.msra.mxu0 %v1475
    %2131 = vmatpush.bf16.msra.mxu0 %v1470
    %2132 = vmatpush.bf16.msra.mxu0 %v1465
    %2133 = vmatpush.bf16.msra.mxu0 %v1460
    %2134 = vmatpush.bf16.msra.mxu0 %v1455
    %2135 = vmatpush.bf16.msra.mxu0 %v1450
    %2136 = vmatpush.bf16.msra.mxu0 %v1445
    %2137 = vmatmul.bf16.gmra.mxu0 %v324
    %v2138 = vpop.f32.mrf.mxu0
    %v2139 = vadd.f32 %v635, %v2138
    %v2140 = vpop.f32.mrf.mxu0
    %2141 = vdwg.mxu0
    %2142 = vmatpush.bf16.msra.mxu0 %v1520
    %2143 = vmatpush.bf16.msra.mxu0 %v1515
    %2144 = vmatpush.bf16.msra.mxu0 %v1510
    %2145 = vmatpush.bf16.msra.mxu0 %v1505
    %2146 = vmatpush.bf16.msra.mxu0 %v1500
    %2147 = vmatpush.bf16.msra.mxu0 %v1495
    %2148 = vmatpush.bf16.msra.mxu0 %v1490
    %2149 = vmatpush.bf16.msra.mxu0 %v1485
    %2150 = vmatmul.bf16.gmra.mxu0 %v325
    %v2151 = vpop.f32.mrf.mxu0
    %v2152 = vadd.f32 %v2139, %v2151
    %v2153 = vpop.f32.mrf.mxu0
    %2154 = vdwg.mxu0
    %2155 = vmatpush.bf16.msra.mxu0 %v1560
    %2156 = vmatpush.bf16.msra.mxu0 %v1555
    %2157 = vmatpush.bf16.msra.mxu0 %v1550
    %2158 = vmatpush.bf16.msra.mxu0 %v1545
    %2159 = vmatpush.bf16.msra.mxu0 %v1540
    %2160 = vmatpush.bf16.msra.mxu0 %v1535
    %2161 = vmatpush.bf16.msra.mxu0 %v1530
    %2162 = vmatpush.bf16.msra.mxu0 %v1525
    %2163 = vmatmul.bf16.gmra.mxu0 %v326
    %v2164 = vpop.f32.mrf.mxu0
    %v2165 = vadd.f32 %v2152, %v2164
    %v2166 = vpop.f32.mrf.mxu0
    %2167 = vdwg.mxu0
    %2168 = vmatpush.bf16.msra.mxu0 %v1600
    %2169 = vmatpush.bf16.msra.mxu0 %v1595
    %2170 = vmatpush.bf16.msra.mxu0 %v1590
    %2171 = vmatpush.bf16.msra.mxu0 %v1585
    %2172 = vmatpush.bf16.msra.mxu0 %v1580
    %2173 = vmatpush.bf16.msra.mxu0 %v1575
    %2174 = vmatpush.bf16.msra.mxu0 %v1570
    %2175 = vmatpush.bf16.msra.mxu0 %v1565
    %2176 = vmatmul.bf16.gmra.mxu0 %v327
    %v2177 = vpop.f32.mrf.mxu0
    %v2178 = vadd.f32 %v2165, %v2177
    %v2179 = vpop.f32.mrf.mxu0
    %2180 = vdwg.mxu0
    %2181 = vmatpush.bf16.msra.mxu0 %v1640
    %2182 = vmatpush.bf16.msra.mxu0 %v1635
    %2183 = vmatpush.bf16.msra.mxu0 %v1630
    %2184 = vmatpush.bf16.msra.mxu0 %v1625
    %2185 = vmatpush.bf16.msra.mxu0 %v1620
    %2186 = vmatpush.bf16.msra.mxu0 %v1615
    %2187 = vmatpush.bf16.msra.mxu0 %v1610
    %2188 = vmatpush.bf16.msra.mxu0 %v1605
    %2189 = vmatmul.bf16.gmra.mxu0 %v328
    %v2190 = vpop.f32.mrf.mxu0
    %v2191 = vadd.f32 %v2178, %v2190
    %v2192 = vpop.f32.mrf.mxu0
    %2193 = vdwg.mxu0
    %2194 = vmatpush.bf16.msra.mxu0 %v1680
    %2195 = vmatpush.bf16.msra.mxu0 %v1675
    %2196 = vmatpush.bf16.msra.mxu0 %v1670
    %2197 = vmatpush.bf16.msra.mxu0 %v1665
    %2198 = vmatpush.bf16.msra.mxu0 %v1660
    %2199 = vmatpush.bf16.msra.mxu0 %v1655
    %2200 = vmatpush.bf16.msra.mxu0 %v1650
    %2201 = vmatpush.bf16.msra.mxu0 %v1645
    %2202 = vmatmul.bf16.gmra.mxu0 %v329
    %v2203 = vpop.f32.mrf.mxu0
    %v2204 = vadd.f32 %v2191, %v2203
    %v2205 = vpop.f32.mrf.mxu0
    %2206 = vdwg.mxu0
    %2207 = vmatpush.bf16.msra.mxu0 0
    %2208 = vmatpush.bf16.msra.mxu0 0
    %2209 = vmatpush.bf16.msra.mxu0 0
    %2210 = vmatpush.bf16.msra.mxu0 0
    %2211 = vmatpush.bf16.msra.mxu0 0
    %2212 = vmatpush.bf16.msra.mxu0 0
    %2213 = vmatpush.bf16.msra.mxu0 %v1690
    %2214 = vmatpush.bf16.msra.mxu0 %v1685
    %2215 = vmatmul.bf16.gmra.mxu0 %v1945
    %v2216 = vpop.f32.mrf.mxu0
    %v2217 = vadd.f32 %v2204, %v2216
    %v2218 = vpop.f32.mrf.mxu0
    %2219 = vdwg.mxu0
    %2220 = vmatpush.bf16.msra.mxu0 %v1481
    %2221 = vmatpush.bf16.msra.mxu0 %v1476
    %2222 = vmatpush.bf16.msra.mxu0 %v1471
    %2223 = vmatpush.bf16.msra.mxu0 %v1466
    %2224 = vmatpush.bf16.msra.mxu0 %v1461
    %2225 = vmatpush.bf16.msra.mxu0 %v1456
    %2226 = vmatpush.bf16.msra.mxu0 %v1451
    %2227 = vmatpush.bf16.msra.mxu0 %v1446
    %2228 = vmatmul.bf16.gmra.mxu0 %v324
    %v2229 = vpop.f32.mrf.mxu0
    %v2230 = vadd.f32 %v636, %v2229
    %v2231 = vpop.f32.mrf.mxu0
    %2232 = vdwg.mxu0
    %2233 = vmatpush.bf16.msra.mxu0 %v1521
    %2234 = vmatpush.bf16.msra.mxu0 %v1516
    %2235 = vmatpush.bf16.msra.mxu0 %v1511
    %2236 = vmatpush.bf16.msra.mxu0 %v1506
    %2237 = vmatpush.bf16.msra.mxu0 %v1501
    %2238 = vmatpush.bf16.msra.mxu0 %v1496
    %2239 = vmatpush.bf16.msra.mxu0 %v1491
    %2240 = vmatpush.bf16.msra.mxu0 %v1486
    %2241 = vmatmul.bf16.gmra.mxu0 %v325
    %v2242 = vpop.f32.mrf.mxu0
    %v2243 = vadd.f32 %v2230, %v2242
    %v2244 = vpop.f32.mrf.mxu0
    %2245 = vdwg.mxu0
    %2246 = vmatpush.bf16.msra.mxu0 %v1561
    %2247 = vmatpush.bf16.msra.mxu0 %v1556
    %2248 = vmatpush.bf16.msra.mxu0 %v1551
    %2249 = vmatpush.bf16.msra.mxu0 %v1546
    %2250 = vmatpush.bf16.msra.mxu0 %v1541
    %2251 = vmatpush.bf16.msra.mxu0 %v1536
    %2252 = vmatpush.bf16.msra.mxu0 %v1531
    %2253 = vmatpush.bf16.msra.mxu0 %v1526
    %2254 = vmatmul.bf16.gmra.mxu0 %v326
    %v2255 = vpop.f32.mrf.mxu0
    %v2256 = vadd.f32 %v2243, %v2255
    %v2257 = vpop.f32.mrf.mxu0
    %2258 = vdwg.mxu0
    %2259 = vmatpush.bf16.msra.mxu0 %v1601
    %2260 = vmatpush.bf16.msra.mxu0 %v1596
    %2261 = vmatpush.bf16.msra.mxu0 %v1591
    %2262 = vmatpush.bf16.msra.mxu0 %v1586
    %2263 = vmatpush.bf16.msra.mxu0 %v1581
    %2264 = vmatpush.bf16.msra.mxu0 %v1576
    %2265 = vmatpush.bf16.msra.mxu0 %v1571
    %2266 = vmatpush.bf16.msra.mxu0 %v1566
    %2267 = vmatmul.bf16.gmra.mxu0 %v327
    %v2268 = vpop.f32.mrf.mxu0
    %v2269 = vadd.f32 %v2256, %v2268
    %v2270 = vpop.f32.mrf.mxu0
    %2271 = vdwg.mxu0
    %2272 = vmatpush.bf16.msra.mxu0 %v1641
    %2273 = vmatpush.bf16.msra.mxu0 %v1636
    %2274 = vmatpush.bf16.msra.mxu0 %v1631
    %2275 = vmatpush.bf16.msra.mxu0 %v1626
    %2276 = vmatpush.bf16.msra.mxu0 %v1621
    %2277 = vmatpush.bf16.msra.mxu0 %v1616
    %2278 = vmatpush.bf16.msra.mxu0 %v1611
    %2279 = vmatpush.bf16.msra.mxu0 %v1606
    %2280 = vmatmul.bf16.gmra.mxu0 %v328
    %v2281 = vpop.f32.mrf.mxu0
    %v2282 = vadd.f32 %v2269, %v2281
    %v2283 = vpop.f32.mrf.mxu0
    %2284 = vdwg.mxu0
    %2285 = vmatpush.bf16.msra.mxu0 %v1681
    %2286 = vmatpush.bf16.msra.mxu0 %v1676
    %2287 = vmatpush.bf16.msra.mxu0 %v1671
    %2288 = vmatpush.bf16.msra.mxu0 %v1666
    %2289 = vmatpush.bf16.msra.mxu0 %v1661
    %2290 = vmatpush.bf16.msra.mxu0 %v1656
    %2291 = vmatpush.bf16.msra.mxu0 %v1651
    %2292 = vmatpush.bf16.msra.mxu0 %v1646
    %2293 = vmatmul.bf16.gmra.mxu0 %v329
    %v2294 = vpop.f32.mrf.mxu0
    %v2295 = vadd.f32 %v2282, %v2294
    %v2296 = vpop.f32.mrf.mxu0
    %2297 = vdwg.mxu0
    %2298 = vmatpush.bf16.msra.mxu0 0
    %2299 = vmatpush.bf16.msra.mxu0 0
    %2300 = vmatpush.bf16.msra.mxu0 0
    %2301 = vmatpush.bf16.msra.mxu0 0
    %2302 = vmatpush.bf16.msra.mxu0 0
    %2303 = vmatpush.bf16.msra.mxu0 0
    %2304 = vmatpush.bf16.msra.mxu0 %v1691
    %2305 = vmatpush.bf16.msra.mxu0 %v1686
    %2306 = vmatmul.bf16.gmra.mxu0 %v1945
    %v2307 = vpop.f32.mrf.mxu0
    %v2308 = vadd.f32 %v2295, %v2307
    %v2309 = vpop.f32.mrf.mxu0
    %2310 = vdwg.mxu0
    %2311 = vmatpush.bf16.msra.mxu0 %v1482
    %2312 = vmatpush.bf16.msra.mxu0 %v1477
    %2313 = vmatpush.bf16.msra.mxu0 %v1472
    %2314 = vmatpush.bf16.msra.mxu0 %v1467
    %2315 = vmatpush.bf16.msra.mxu0 %v1462
    %2316 = vmatpush.bf16.msra.mxu0 %v1457
    %2317 = vmatpush.bf16.msra.mxu0 %v1452
    %2318 = vmatpush.bf16.msra.mxu0 %v1447
    %2319 = vmatmul.bf16.gmra.mxu0 %v324
    %v2320 = vpop.f32.mrf.mxu0
    %v2321 = vadd.f32 %v637, %v2320
    %v2322 = vpop.f32.mrf.mxu0
    %2323 = vdwg.mxu0
    %2324 = vmatpush.bf16.msra.mxu0 %v1522
    %2325 = vmatpush.bf16.msra.mxu0 %v1517
    %2326 = vmatpush.bf16.msra.mxu0 %v1512
    %2327 = vmatpush.bf16.msra.mxu0 %v1507
    %2328 = vmatpush.bf16.msra.mxu0 %v1502
    %2329 = vmatpush.bf16.msra.mxu0 %v1497
    %2330 = vmatpush.bf16.msra.mxu0 %v1492
    %2331 = vmatpush.bf16.msra.mxu0 %v1487
    %2332 = vmatmul.bf16.gmra.mxu0 %v325
    %v2333 = vpop.f32.mrf.mxu0
    %v2334 = vadd.f32 %v2321, %v2333
    %v2335 = vpop.f32.mrf.mxu0
    %2336 = vdwg.mxu0
    %2337 = vmatpush.bf16.msra.mxu0 %v1562
    %2338 = vmatpush.bf16.msra.mxu0 %v1557
    %2339 = vmatpush.bf16.msra.mxu0 %v1552
    %2340 = vmatpush.bf16.msra.mxu0 %v1547
    %2341 = vmatpush.bf16.msra.mxu0 %v1542
    %2342 = vmatpush.bf16.msra.mxu0 %v1537
    %2343 = vmatpush.bf16.msra.mxu0 %v1532
    %2344 = vmatpush.bf16.msra.mxu0 %v1527
    %2345 = vmatmul.bf16.gmra.mxu0 %v326
    %v2346 = vpop.f32.mrf.mxu0
    %v2347 = vadd.f32 %v2334, %v2346
    %v2348 = vpop.f32.mrf.mxu0
    %2349 = vdwg.mxu0
    %2350 = vmatpush.bf16.msra.mxu0 %v1602
    %2351 = vmatpush.bf16.msra.mxu0 %v1597
    %2352 = vmatpush.bf16.msra.mxu0 %v1592
    %2353 = vmatpush.bf16.msra.mxu0 %v1587
    %2354 = vmatpush.bf16.msra.mxu0 %v1582
    %2355 = vmatpush.bf16.msra.mxu0 %v1577
    %2356 = vmatpush.bf16.msra.mxu0 %v1572
    %2357 = vmatpush.bf16.msra.mxu0 %v1567
    %2358 = vmatmul.bf16.gmra.mxu0 %v327
    %v2359 = vpop.f32.mrf.mxu0
    %v2360 = vadd.f32 %v2347, %v2359
    %v2361 = vpop.f32.mrf.mxu0
    %2362 = vdwg.mxu0
    %2363 = vmatpush.bf16.msra.mxu0 %v1642
    %2364 = vmatpush.bf16.msra.mxu0 %v1637
    %2365 = vmatpush.bf16.msra.mxu0 %v1632
    %2366 = vmatpush.bf16.msra.mxu0 %v1627
    %2367 = vmatpush.bf16.msra.mxu0 %v1622
    %2368 = vmatpush.bf16.msra.mxu0 %v1617
    %2369 = vmatpush.bf16.msra.mxu0 %v1612
    %2370 = vmatpush.bf16.msra.mxu0 %v1607
    %2371 = vmatmul.bf16.gmra.mxu0 %v328
    %v2372 = vpop.f32.mrf.mxu0
    %v2373 = vadd.f32 %v2360, %v2372
    %v2374 = vpop.f32.mrf.mxu0
    %2375 = vdwg.mxu0
    %2376 = vmatpush.bf16.msra.mxu0 %v1682
    %2377 = vmatpush.bf16.msra.mxu0 %v1677
    %2378 = vmatpush.bf16.msra.mxu0 %v1672
    %2379 = vmatpush.bf16.msra.mxu0 %v1667
    %2380 = vmatpush.bf16.msra.mxu0 %v1662
    %2381 = vmatpush.bf16.msra.mxu0 %v1657
    %2382 = vmatpush.bf16.msra.mxu0 %v1652
    %2383 = vmatpush.bf16.msra.mxu0 %v1647
    %2384 = vmatmul.bf16.gmra.mxu0 %v329
    %v2385 = vpop.f32.mrf.mxu0
    %v2386 = vadd.f32 %v2373, %v2385
    %v2387 = vpop.f32.mrf.mxu0
    %2388 = vdwg.mxu0
    %2389 = vmatpush.bf16.msra.mxu0 0
    %2390 = vmatpush.bf16.msra.mxu0 0
    %2391 = vmatpush.bf16.msra.mxu0 0
    %2392 = vmatpush.bf16.msra.mxu0 0
    %2393 = vmatpush.bf16.msra.mxu0 0
    %2394 = vmatpush.bf16.msra.mxu0 0
    %2395 = vmatpush.bf16.msra.mxu0 %v1692
    %2396 = vmatpush.bf16.msra.mxu0 %v1687
    %2397 = vmatmul.bf16.gmra.mxu0 %v1945
    %v2398 = vpop.f32.mrf.mxu0
    %v2399 = vadd.f32 %v2386, %v2398
    %v2400 = vpop.f32.mrf.mxu0
    %2401 = vdwg.mxu0
    %v2402 = vmax.f32 %v2035, 0.0
    %v2403 = vmax.f32 %v2126, 0.0
    %v2404 = vmax.f32 %v2217, 0.0
    %v2405 = vmax.f32 %v2308, 0.0
    %v2406 = vmax.f32 %v2399, 0.0
    %v2407 = vpack.c.bf16 %v2402, %v2402
    %v2408 = vpack.c.bf16 %v2403, %v2403
    %v2409 = vpack.c.bf16 %v2404, %v2404
    %v2410 = vpack.c.bf16 %v2405, %v2405
    %v2411 = vpack.c.bf16 %v2406, %v2406
    %v2412 = vld [vmem:[#allocation11] sm:$0xf]
    %v2413 = vld [vmem:[#allocation11 + $0x4] sm:$0xf]
    %v2414 = vld [vmem:[#allocation11 + $0x8] sm:$0xf]
    %v2415 = vld [vmem:[#allocation11 + $0xc] sm:$0xf]
    %v2416 = vld [vmem:[#allocation11 + $0x10] sm:$0xf]
    %v2417 = vld [vmem:[#allocation11 + $0x14] sm:$0xf]
    %v2418 = vld [vmem:[#allocation11 + $0x18] sm:$0xf]
    %v2419 = vld [vmem:[#allocation11 + $0x1c] sm:$0xf]
    %v2420 = vld [vmem:[#allocation11 + $0x20] sm:$0xf]
    %v2421 = vld [vmem:[#allocation11 + $0x24] sm:$0xf]
    %v2422 = vld [vmem:[#allocation11 + $0x28] sm:$0xf]
    %v2423 = vld [vmem:[#allocation11 + $0x2c] sm:$0xf]
    %v2424 = vld [vmem:[#allocation11 + $0x30] sm:$0xf]
    %v2425 = vld [vmem:[#allocation11 + $0x34] sm:$0xf]
    %v2426 = vld [vmem:[#allocation11 + $0x38] sm:$0xf]
    %v2427 = vld [vmem:[#allocation11 + $0x3c] sm:$0xf]
    %v2428 = vld [vmem:[#allocation11 + $0x40] sm:$0xf]
    %v2429 = vld [vmem:[#allocation11 + $0x44] sm:$0xf]
    %v2430 = vld [vmem:[#allocation11 + $0x48] sm:$0xf]
    %v2431 = vld [vmem:[#allocation11 + $0x4c] sm:$0xf]
    %v2432 = vld [vmem:[#allocation11 + $0x50] sm:$0xf]
    %v2433 = vld [vmem:[#allocation11 + $0x54] sm:$0xf]
    %v2434 = vld [vmem:[#allocation11 + $0x58] sm:$0xf]
    %v2435 = vld [vmem:[#allocation11 + $0x5c] sm:$0xf]
    %v2436 = vld [vmem:[#allocation11 + $0x60] sm:$0xf]
    %v2437 = vld [vmem:[#allocation11 + $0x64] sm:$0xf]
    %v2438 = vld [vmem:[#allocation11 + $0x68] sm:$0xf]
    %v2439 = vld [vmem:[#allocation11 + $0x6c] sm:$0xf]
    %v2440 = vld [vmem:[#allocation11 + $0x70] sm:$0xf]
    %v2441 = vld [vmem:[#allocation11 + $0x74] sm:$0xf]
    %v2442 = vld [vmem:[#allocation11 + $0x78] sm:$0xf]
    %v2443 = vld [vmem:[#allocation11 + $0x7c] sm:$0xf]
    %v2444 = vld [vmem:[#allocation11 + $0x80] sm:$0xf]
    %v2445 = vld [vmem:[#allocation11 + $0x84] sm:$0xf]
    %v2446 = vld [vmem:[#allocation11 + $0x88] sm:$0xf]
    %v2447 = vld [vmem:[#allocation11 + $0x8c] sm:$0xf]
    %v2448 = vld [vmem:[#allocation11 + $0x90] sm:$0xf]
    %v2449 = vld [vmem:[#allocation11 + $0x94] sm:$0xf]
    %v2450 = vld [vmem:[#allocation11 + $0x98] sm:$0xf]
    %v2451 = vld [vmem:[#allocation11 + $0x9c] sm:$0xf]
    %v2452 = vld [vmem:[#allocation11 + $0xa0] sm:$0xf]
    %v2453 = vld [vmem:[#allocation11 + $0xa4] sm:$0xf]
    %v2454 = vld [vmem:[#allocation11 + $0xa8] sm:$0xf]
    %v2455 = vld [vmem:[#allocation11 + $0xac] sm:$0xf]
    %v2456 = vld [vmem:[#allocation11 + $0xb0] sm:$0xf]
    %v2457 = vld [vmem:[#allocation11 + $0xb4] sm:$0xf]
    %v2458 = vld [vmem:[#allocation11 + $0xb8] sm:$0xf]
    %v2459 = vld [vmem:[#allocation11 + $0xbc] sm:$0xf]
    %v2460 = vld [vmem:[#allocation11 + $0xc0] sm:$0xf]
    %v2461 = vld [vmem:[#allocation11 + $0xc4] sm:$0xf]
    %v2462 = vld [vmem:[#allocation11 + $0xc8] sm:$0xf]
    %v2463 = vld [vmem:[#allocation11 + $0xcc] sm:$0xf]
    %v2464 = vld [vmem:[#allocation11 + $0xd0] sm:$0xf]
    %v2465 = vld [vmem:[#allocation11 + $0xd4] sm:$0xf]
    %v2466 = vld [vmem:[#allocation11 + $0xd8] sm:$0xf]
    %v2467 = vld [vmem:[#allocation11 + $0xdc] sm:$0xf]
    %v2468 = vld [vmem:[#allocation11 + $0xe0] sm:$0xf]
    %v2469 = vld [vmem:[#allocation11 + $0xe4] sm:$0xf]
    %v2470 = vld [vmem:[#allocation11 + $0xe8] sm:$0xf]
    %v2471 = vld [vmem:[#allocation11 + $0xec] sm:$0xf]
    %v2472 = vld [vmem:[#allocation11 + $0xf0] sm:$0xf]
    %v2473 = vld [vmem:[#allocation11 + $0xf4] sm:$0xf]
    %v2474 = vld [vmem:[#allocation11 + $0xf8] sm:$0xf]
    %v2475 = vld [vmem:[#allocation11 + $0xfc] sm:$0xf]
    %v2476 = vld [vmem:[#allocation11 + $0x100] sm:$0xf]
    %v2477 = vld [vmem:[#allocation11 + $0x104] sm:$0xf]
    %v2478 = vld [vmem:[#allocation11 + $0x108] sm:$0xf]
    %v2479 = vld [vmem:[#allocation11 + $0x10c] sm:$0xf]
    %v2480 = vld [vmem:[#allocation11 + $0x110] sm:$0xf]
    %v2481 = vld [vmem:[#allocation11 + $0x114] sm:$0xf]
    %v2482 = vld [vmem:[#allocation11 + $0x118] sm:$0xf]
    %v2483 = vld [vmem:[#allocation11 + $0x11c] sm:$0xf]
    %v2484 = vld [vmem:[#allocation11 + $0x120] sm:$0xf]
    %v2485 = vld [vmem:[#allocation11 + $0x124] sm:$0xf]
    %v2486 = vld [vmem:[#allocation11 + $0x128] sm:$0xf]
    %v2487 = vld [vmem:[%s6] sm:$0x1]
    %v2489 = vperm.slane %v2487, 0
    %v2566 = vunpack.c.l.b16 %v2412
    %v2567 = vunpack.c.l.b16 %v2413
    %v2568 = vunpack.c.l.b16 %v2414
    %v2569 = vunpack.c.l.b16 %v2415
    %v2570 = vunpack.c.l.b16 %v2416
    %v2571 = vunpack.c.l.b16 %v2417
    %v2572 = vunpack.c.l.b16 %v2418
    %v2573 = vunpack.c.l.b16 %v2419
    %v2574 = vunpack.c.l.b16 %v2420
    %v2575 = vunpack.c.l.b16 %v2421
    %v2576 = vunpack.c.l.b16 %v2422
    %v2577 = vunpack.c.l.b16 %v2423
    %v2578 = vunpack.c.l.b16 %v2424
    %v2579 = vunpack.c.l.b16 %v2425
    %v2580 = vunpack.c.l.b16 %v2426
    %v2581 = vunpack.c.l.b16 %v2427
    %v2582 = vunpack.c.l.b16 %v2428
    %v2583 = vunpack.c.l.b16 %v2429
    %v2584 = vunpack.c.l.b16 %v2430
    %v2585 = vunpack.c.l.b16 %v2431
    %v2586 = vunpack.c.l.b16 %v2432
    %v2587 = vunpack.c.l.b16 %v2433
    %v2588 = vunpack.c.l.b16 %v2434
    %v2589 = vunpack.c.l.b16 %v2435
    %v2590 = vunpack.c.l.b16 %v2436
    %v2591 = vunpack.c.l.b16 %v2437
    %v2592 = vunpack.c.l.b16 %v2438
    %v2593 = vunpack.c.l.b16 %v2439
    %v2594 = vunpack.c.l.b16 %v2440
    %v2595 = vunpack.c.l.b16 %v2441
    %v2596 = vunpack.c.l.b16 %v2442
    %v2597 = vunpack.c.l.b16 %v2443
    %v2598 = vunpack.c.l.b16 %v2444
    %v2599 = vunpack.c.l.b16 %v2445
    %v2600 = vunpack.c.l.b16 %v2446
    %v2601 = vunpack.c.l.b16 %v2447
    %v2602 = vunpack.c.l.b16 %v2448
    %v2603 = vunpack.c.l.b16 %v2449
    %v2604 = vunpack.c.l.b16 %v2450
    %v2605 = vunpack.c.l.b16 %v2451
    %v2606 = vunpack.c.l.b16 %v2452
    %v2607 = vunpack.c.l.b16 %v2453
    %v2608 = vunpack.c.l.b16 %v2454
    %v2609 = vunpack.c.l.b16 %v2455
    %v2610 = vunpack.c.l.b16 %v2456
    %v2611 = vunpack.c.l.b16 %v2457
    %v2612 = vunpack.c.l.b16 %v2458
    %v2613 = vunpack.c.l.b16 %v2459
    %v2614 = vunpack.c.l.b16 %v2460
    %v2615 = vunpack.c.l.b16 %v2461
    %v2616 = vunpack.c.l.b16 %v2462
    %v2617 = vunpack.c.l.b16 %v2463
    %v2618 = vunpack.c.l.b16 %v2464
    %v2619 = vunpack.c.l.b16 %v2465
    %v2620 = vunpack.c.l.b16 %v2466
    %v2621 = vunpack.c.l.b16 %v2467
    %v2622 = vunpack.c.l.b16 %v2468
    %v2623 = vunpack.c.l.b16 %v2469
    %v2624 = vunpack.c.l.b16 %v2470
    %v2625 = vunpack.c.l.b16 %v2471
    %v2626 = vunpack.c.l.b16 %v2472
    %v2627 = vunpack.c.l.b16 %v2473
    %v2628 = vunpack.c.l.b16 %v2474
    %v2629 = vunpack.c.l.b16 %v2475
    %v2630 = vunpack.c.l.b16 %v2476
    %v2631 = vunpack.c.l.b16 %v2477
    %v2632 = vunpack.c.l.b16 %v2478
    %v2633 = vunpack.c.l.b16 %v2479
    %v2634 = vunpack.c.l.b16 %v2480
    %v2635 = vunpack.c.l.b16 %v2481
    %v2636 = vunpack.c.l.b16 %v2482
    %v2637 = vunpack.c.l.b16 %v2483
    %v2638 = vunpack.c.l.b16 %v2484
    %v2639 = vunpack.c.l.b16 %v2485
    %v2640 = vunpack.c.l.b16 %v2486
    %v2641 = vpack.c.b16 %v2567, %v2566
    %v2642 = vpack.c.b16 %v2569, %v2568
    %v2643 = vpack.c.b16 %v2571, %v2570
    %v2644 = vpack.c.b16 %v2573, %v2572
    %v2645 = vpack.c.b16 %v2575, %v2574
    %v2646 = vpack.c.b16 %v2577, %v2576
    %v2647 = vpack.c.b16 %v2579, %v2578
    %v2648 = vpack.c.b16 %v2581, %v2580
    %v2649 = vpack.c.b16 %v2583, %v2582
    %v2650 = vpack.c.b16 %v2585, %v2584
    %v2651 = vpack.c.b16 %v2587, %v2586
    %v2652 = vpack.c.b16 %v2589, %v2588
    %v2653 = vpack.c.b16 %v2591, %v2590
    %v2654 = vpack.c.b16 %v2593, %v2592
    %v2655 = vpack.c.b16 %v2595, %v2594
    %v2656 = vpack.c.b16 %v2597, %v2596
    %v2657 = vpack.c.b16 %v2599, %v2598
    %v2658 = vpack.c.b16 %v2601, %v2600
    %v2659 = vpack.c.b16 %v2603, %v2602
    %v2660 = vpack.c.b16 %v2605, %v2604
    %v2661 = vpack.c.b16 %v2607, %v2606
    %v2662 = vpack.c.b16 %v2609, %v2608
    %v2663 = vpack.c.b16 %v2611, %v2610
    %v2664 = vpack.c.b16 %v2613, %v2612
    %v2665 = vpack.c.b16 %v2615, %v2614
    %v2666 = vpack.c.b16 %v2617, %v2616
    %v2667 = vpack.c.b16 %v2619, %v2618
    %v2668 = vpack.c.b16 %v2621, %v2620
    %v2669 = vpack.c.b16 %v2623, %v2622
    %v2670 = vpack.c.b16 %v2625, %v2624
    %v2671 = vpack.c.b16 %v2627, %v2626
    %v2672 = vpack.c.b16 %v2629, %v2628
    %v2673 = vpack.c.b16 %v2631, %v2630
    %v2674 = vpack.c.b16 %v2633, %v2632
    %v2675 = vpack.c.b16 %v2635, %v2634
    %v2676 = vpack.c.b16 %v2637, %v2636
    %v2677 = vpack.c.b16 %v2639, %v2638
    %v2678 = vpack.c.b16 %v2640, %v2640
    %vm2716 = vcmask 719872
    %v2718 = vsel %vm2716, %v2411, 0
    %v2721 = vsel %vm204, %v2678, 0
    %2723 = vmatpush.bf16.msra.mxu0 %v2648
    %2724 = vmatpush.bf16.msra.mxu0 %v2647
    %2725 = vmatpush.bf16.msra.mxu0 %v2646
    %2726 = vmatpush.bf16.msra.mxu0 %v2645
    %2727 = vmatpush.bf16.msra.mxu0 %v2644
    %2728 = vmatpush.bf16.msra.mxu0 %v2643
    %2729 = vmatpush.bf16.msra.mxu0 %v2642
    %2730 = vmatpush.bf16.msra.mxu0 %v2641
    %2731 = vmatmul.bf16.gmra.mxu0 %v2407
    %v2732 = vpop.f32.mrf.mxu0
    %v2733 = vadd.f32 %v2489, %v2732
    %v2734 = vpop.f32.mrf.mxu0
    %2735 = vdwg.mxu0
    %2736 = vmatpush.bf16.msra.mxu0 %v2656
    %2737 = vmatpush.bf16.msra.mxu0 %v2655
    %2738 = vmatpush.bf16.msra.mxu0 %v2654
    %2739 = vmatpush.bf16.msra.mxu0 %v2653
    %2740 = vmatpush.bf16.msra.mxu0 %v2652
    %2741 = vmatpush.bf16.msra.mxu0 %v2651
    %2742 = vmatpush.bf16.msra.mxu0 %v2650
    %2743 = vmatpush.bf16.msra.mxu0 %v2649
    %2744 = vmatmul.bf16.gmra.mxu0 %v2408
    %v2745 = vpop.f32.mrf.mxu0
    %v2746 = vadd.f32 %v2733, %v2745
    %v2747 = vpop.f32.mrf.mxu0
    %2748 = vdwg.mxu0
    %2749 = vmatpush.bf16.msra.mxu0 %v2664
    %2750 = vmatpush.bf16.msra.mxu0 %v2663
    %2751 = vmatpush.bf16.msra.mxu0 %v2662
    %2752 = vmatpush.bf16.msra.mxu0 %v2661
    %2753 = vmatpush.bf16.msra.mxu0 %v2660
    %2754 = vmatpush.bf16.msra.mxu0 %v2659
    %2755 = vmatpush.bf16.msra.mxu0 %v2658
    %2756 = vmatpush.bf16.msra.mxu0 %v2657
    %2757 = vmatmul.bf16.gmra.mxu0 %v2409
    %v2758 = vpop.f32.mrf.mxu0
    %v2759 = vadd.f32 %v2746, %v2758
    %v2760 = vpop.f32.mrf.mxu0
    %2761 = vdwg.mxu0
    %2762 = vmatpush.bf16.msra.mxu0 %v2672
    %2763 = vmatpush.bf16.msra.mxu0 %v2671
    %2764 = vmatpush.bf16.msra.mxu0 %v2670
    %2765 = vmatpush.bf16.msra.mxu0 %v2669
    %2766 = vmatpush.bf16.msra.mxu0 %v2668
    %2767 = vmatpush.bf16.msra.mxu0 %v2667
    %2768 = vmatpush.bf16.msra.mxu0 %v2666
    %2769 = vmatpush.bf16.msra.mxu0 %v2665
    %2770 = vmatmul.bf16.gmra.mxu0 %v2410
    %v2771 = vpop.f32.mrf.mxu0
    %v2772 = vadd.f32 %v2759, %v2771
    %v2773 = vpop.f32.mrf.mxu0
    %2774 = vdwg.mxu0
    %2775 = vmatpush.bf16.msra.mxu0 0
    %2776 = vmatpush.bf16.msra.mxu0 0
    %2777 = vmatpush.bf16.msra.mxu0 %v2721
    %2778 = vmatpush.bf16.msra.mxu0 %v2677
    %2779 = vmatpush.bf16.msra.mxu0 %v2676
    %2780 = vmatpush.bf16.msra.mxu0 %v2675
    %2781 = vmatpush.bf16.msra.mxu0 %v2674
    %2782 = vmatpush.bf16.msra.mxu0 %v2673
    %2783 = vmatmul.bf16.gmra.mxu0 %v2718
    %v2784 = vpop.f32.mrf.mxu0
    %v2785 = vadd.f32 %v2772, %v2784
    %v2786 = vpop.f32.mrf.mxu0
    %2787 = vdwg.mxu0
    %v2788 = vtanh.pop %v2785
    %2789 = vst [vmem:[#allocation13] sm:$0xff] %v2788
    // Predicated region
    $region54: #{tpu_custom_call.1} parent=1 // pred_check
      _
    $region55: #{tpu_custom_call.1} parent=1 // pred_check_branch
      %2791 = sbr.rel (0) target = $region57
    $region56: #{tpu_custom_call.1} parent=1 // pred_region
      %2793 = vsyncadd [#allocation4], 0
      %s2795 = sshll.u32 [#allocation13], 4
      %s2796 = int_to_ptr.vmem [resolvable:$true] %s2795
      %s2797 = sshll.u32 %s7, 4
      %s2798 = int_to_ptr.hbm [resolvable:$true] %s2797
      %2800 = dma.vmem_to_hbm [thread:$0]  %s2796, 128, %s2798, [#allocation4]
    $region57: #{tpu_custom_call.1} parent=1 // pred_fallthru
      _
    // Predicated region
    $region58: #{tpu_custom_call.1} parent=1 // pred_check
      _
    $region59: #{tpu_custom_call.1} parent=1 // pred_check_branch
      %2802 = sbr.rel (0) target = $region61
    $region60: #{tpu_custom_call.1} parent=1 // pred_region
      %2804 = dma.done [#allocation4], 128
    $region61: #{tpu_custom_call.1} parent=1 // pred_fallthru
      _
    %2805 = vsyncpa [#allocation3], 1
    %2806 = vsyncpa [#allocation6], 1
    %2807 = vsyncpa [#allocation9], 1
    %2808 = vsyncpa [#allocation12], 1
    %2809 = vsyncpa [#allocation4], 1

</llo_original>
